<compile_context>
chip_gen: v7x
topology: tpu7x:2x2x1
jax: 0.10.0
libtpu: 0.0.40
codegen_flags: <defaults>
</compile_context>

<pallas_src>
import functools

import jax
import jax.numpy as jnp
from jax import lax
from jax.experimental import pallas as pl
from jax.experimental.pallas import tpu as pltpu


# ---------------------------------------------------------------------------
# Parameter preparation (call ONCE at model-load time, not per forward).
# ---------------------------------------------------------------------------
def prepare_params(params, *, dim_head, compute_dtype=jnp.float32):
    """Fold the softmax scale into Wq, concatenate Wq|Wk|Wv (self-attn) and Wk|Wv
    (cross-attn), and cast the matmul weights to the MXU compute dtype.  The bias stays
    f32 (it is added to the f32 accumulator)."""
    scale = dim_head ** (-0.5)
    wq_scaled = params["wq"] * scale
    return {
        "wq": wq_scaled.astype(compute_dtype),
        "wqkv": jnp.concatenate([wq_scaled, params["wk"], params["wv"]],
                                axis=1).astype(compute_dtype),
        "wkv": jnp.concatenate([params["wk"], params["wv"]], axis=1).astype(compute_dtype),
        "wo": params["wo"].astype(compute_dtype),
        "bo": params["bo"].astype(jnp.float32),
    }


# ---------------------------------------------------------------------------
# Batch-tile (grid) policy: collapse the batch on single-TC chips, keep a parallel
# batch grid on multi-TC chips (v7x).  Falls back to "collapse" if detection fails.
# ---------------------------------------------------------------------------
def _pick_batch_tile(B, N, batch_tile=None):
    if batch_tile is None:
        try:
            kind = jax.devices()[0].device_kind.lower()
        except Exception:
            kind = ""
        multi_tc = ("v7" in kind) or ("7x" in kind)
        batch_tile = 1 if (multi_tc and B > 1) else B
    bt = batch_tile
    if B % bt != 0:
        bt = B
    # keep the packed 2-D (bt*N, C) output block legal under the (8, 128) tiling rule
    if bt != B and (bt * N) % 8 != 0:
        bt = B
    return bt


# ---------------------------------------------------------------------------
# Shared in-kernel body for ONE batch element: per-head attention with the head-merge
# folded into the output projection.  q: (Nq, H*Dh) f32 (scale already folded into Wq),
# k/v: (Nkv, H*Dh) f32.  Writes rows [row_offset, row_offset+Nq) of o_ref.
# ---------------------------------------------------------------------------
def _attend_project(q, k, v, wo, bo, o_ref, *, row_offset, heads, dim_head, compute_dtype):
    H, Dh = heads, dim_head
    n_q = q.shape[0]
    acc = None
    for h in range(H):                                   # static -> unrolled at trace time
        qh = q[:, h * Dh:(h + 1) * Dh].astype(compute_dtype)      # (Nq, Dh)
        kh = k[:, h * Dh:(h + 1) * Dh].astype(compute_dtype)      # (Nkv, Dh)
        vh = v[:, h * Dh:(h + 1) * Dh].astype(compute_dtype)      # (Nkv, Dh)

        # sim = q k^T, contracting last dims directly (no materialized transpose).
        sim = lax.dot_general(qh, kh, (((1,), (1,)), ((), ())),
                              preferred_element_type=jnp.float32)  # (Nq, Nkv) f32
        m = jnp.max(sim, axis=-1, keepdims=True)                   # f32 softmax throughout
        p = jnp.exp(sim - m)
        denom = jnp.sum(p, axis=-1, keepdims=True)
        attn = p * pl.reciprocal(denom, approx=True)               # EUP reciprocal

        oh = jnp.dot(attn.astype(compute_dtype), vh,
                     preferred_element_type=jnp.float32)           # (Nq, Dh) f32

        # Head merge folded into to_out: sum_h oh @ Wo[h*Dh:(h+1)*Dh], f32 accumulate.
        contrib = jnp.dot(oh.astype(compute_dtype), wo[h * Dh:(h + 1) * Dh, :],
                          preferred_element_type=jnp.float32)      # (Nq, Dq) f32
        acc = contrib if acc is None else acc + contrib

    o_ref[row_offset:row_offset + n_q, :] = (acc + bo).astype(o_ref.dtype)


# ---------------------------------------------------------------------------
# Fused self-attention kernel (context is None): one (Din, 3*inner) projection per batch.
# ---------------------------------------------------------------------------
def _self_attn_kernel(x_ref, wqkv_ref, wo_ref, bo_ref, o_ref,
                      *, bt, heads, dim_head, compute_dtype):
    inner = heads * dim_head
    N = x_ref.shape[1]
    wqkv = wqkv_ref[...]
    wo = wo_ref[...]
    bo = bo_ref[...]
    for b in range(bt):                                  # static: bt=B on single-TC chips
        x = x_ref[b].astype(compute_dtype)               # (N, Dq)
        qkv = jnp.dot(x, wqkv, preferred_element_type=jnp.float32)  # (N, 3*inner); scale in Wq
        _attend_project(qkv[:, :inner], qkv[:, inner:2 * inner], qkv[:, 2 * inner:],
                        wo, bo, o_ref, row_offset=b * N,
                        heads=heads, dim_head=dim_head, compute_dtype=compute_dtype)


# ---------------------------------------------------------------------------
# Fused cross-attention kernel (explicit context): Wq on x, concatenated Wk|Wv on context.
# ---------------------------------------------------------------------------
def _cross_attn_kernel(x_ref, ctx_ref, wq_ref, wkv_ref, wo_ref, bo_ref, o_ref,
                       *, bt, heads, dim_head, compute_dtype):
    inner = heads * dim_head
    N = x_ref.shape[1]
    wq = wq_ref[...]
    wkv = wkv_ref[...]
    wo = wo_ref[...]
    bo = bo_ref[...]
    for b in range(bt):                                  # static unroll
        x = x_ref[b].astype(compute_dtype)               # (N, Dq)
        ctx = ctx_ref[b].astype(compute_dtype)           # (M, Dc)
        q = jnp.dot(x, wq, preferred_element_type=jnp.float32)       # (N, inner); scale in Wq
        kv = jnp.dot(ctx, wkv, preferred_element_type=jnp.float32)   # (M, 2*inner)
        _attend_project(q, kv[:, :inner], kv[:, inner:],
                        wo, bo, o_ref, row_offset=b * N,
                        heads=heads, dim_head=dim_head, compute_dtype=compute_dtype)


# ---------------------------------------------------------------------------
# Wrapper: single pallas_call; grid = (B // bt,) over batch tiles.
# ---------------------------------------------------------------------------
def cross_attention_forward(x, prepped, *, heads, dim_head, context=None, mask=None,
                            batch_tile=None):
    if mask is not None:
        # TODO(synk): implement the masked_fill(-finfo.max) path; fail loudly instead of
        # silently returning unmasked attention.
        raise NotImplementedError("mask path not implemented in the Pallas kernel")

    B, N, query_dim = x.shape
    inner = heads * dim_head
    bt = _pick_batch_tile(B, N, batch_tile)
    compute_dtype = prepped["wo"].dtype

    cp = pltpu.CompilerParams(dimension_semantics=("parallel",))

    def resident(arr):
        nd = arr.ndim
        return pl.BlockSpec(arr.shape, lambda g, _nd=nd: (0,) * _nd)  # stays in VMEM

    batched3 = lambda seq, ch: pl.BlockSpec((bt, seq, ch), lambda g: (g, 0, 0))
    # Packed 2-D output: multiple rows per store; wrapper reshape back is free (row-major).
    out_shape = jax.ShapeDtypeStruct((B * N, query_dim), x.dtype)
    out_spec = pl.BlockSpec((bt * N, query_dim), lambda g: (g, 0))

    if context is None:
        kernel = functools.partial(_self_attn_kernel, bt=bt, heads=heads,
                                   dim_head=dim_head, compute_dtype=compute_dtype)
        out = pl.pallas_call(
            kernel,
            out_shape=out_shape,
            grid_spec=pltpu.PrefetchScalarGridSpec(
                num_scalar_prefetch=0,
                grid=(B // bt,),
                in_specs=[batched3(N, query_dim),
                          resident(prepped["wqkv"]),
                          resident(prepped["wo"]),
                          resident(prepped["bo"])],
                out_specs=out_spec,
            ),
            compiler_params=cp,
        )(x, prepped["wqkv"], prepped["wo"], prepped["bo"])
    else:
        _, M, context_dim = context.shape
        kernel = functools.partial(_cross_attn_kernel, bt=bt, heads=heads,
                                   dim_head=dim_head, compute_dtype=compute_dtype)
        out = pl.pallas_call(
            kernel,
            out_shape=out_shape,
            grid_spec=pltpu.PrefetchScalarGridSpec(
                num_scalar_prefetch=0,
                grid=(B // bt,),
                in_specs=[batched3(N, query_dim),
                          batched3(M, context_dim),
                          resident(prepped["wq"]),
                          resident(prepped["wkv"]),
                          resident(prepped["wo"]),
                          resident(prepped["bo"])],
                out_specs=out_spec,
            ),
            compiler_params=cp,
        )(x, context, prepped["wq"], prepped["wkv"], prepped["wo"], prepped["bo"])

    return out.reshape(B, N, query_dim)


# ---------------------------------------------------------------------------
# Pure-JAX reference (mirrors the PyTorch forward, mask=None, dropout=0, f32).
# ---------------------------------------------------------------------------
def cross_attention_reference(x, params, *, heads, dim_head, context=None):
    B, N, query_dim = x.shape
    if context is None:
        context = x
    M = context.shape[1]
    inner = heads * dim_head
    scale = dim_head ** (-0.5)

    q = x @ params["wq"]
    k = context @ params["wk"]
    v = context @ params["wv"]

    def split_heads(t, seq):
        return (t.reshape(B, seq, heads, dim_head)
                 .transpose(0, 2, 1, 3)
                 .reshape(B * heads, seq, dim_head))

    qh, kh, vh = split_heads(q, N), split_heads(k, M), split_heads(v, M)
    sim = jnp.einsum("bid,bjd->bij", qh, kh) * scale
    attn = jax.nn.softmax(sim, axis=-1)
    out = jnp.einsum("bij,bjd->bid", attn, vh)
    out = (out.reshape(B, heads, N, dim_head)
              .transpose(0, 2, 1, 3)
              .reshape(B, N, inner))
    return out @ params["wo"] + params["bo"][0]


if __name__ == "__main__":
    # Small shapes consistent with the module's forward.
    B, N, M = 2, 8, 12
    query_dim = 32
    heads, dim_head = 2, 16
    inner_dim = heads * dim_head  # 32
    dtype = jnp.float32

    key = jax.random.PRNGKey(0)
    kx, kc, kq, kk, kv, ko, kb = jax.random.split(key, 7)

    x = jax.random.normal(kx, (B, N, query_dim), dtype=dtype)
    ctx = jax.random.normal(kc, (B, M, query_dim), dtype=dtype)

    params = {
        "wq": jax.random.normal(kq, (query_dim, inner_dim), dtype=dtype) * 0.05,
        "wk": jax.random.normal(kk, (query_dim, inner_dim), dtype=dtype) * 0.05,
        "wv": jax.random.normal(kv, (query_dim, inner_dim), dtype=dtype) * 0.05,
        "wo": jax.random.normal(ko, (inner_dim, query_dim), dtype=dtype) * 0.05,
        "bo": jax.random.normal(kb, (1, query_dim), dtype=dtype) * 0.05,
    }

    ref_self = cross_attention_reference(x, params, heads=heads, dim_head=dim_head, context=None)
    ref_cross = cross_attention_reference(x, params, heads=heads, dim_head=dim_head, context=ctx)

    # f32 MXU operands: tolerance relaxed vs 1e-5 only for the approximate EUP reciprocal
    # in the softmax denominator (~1e-4 rel error).
    prepped_f32 = prepare_params(params, dim_head=dim_head, compute_dtype=jnp.float32)
    TOL_F32 = dict(atol=5e-3, rtol=5e-3)

    out_self = jax.block_until_ready(
        cross_attention_forward(x, prepped_f32, heads=heads, dim_head=dim_head, context=None))
    assert out_self.shape == (B, N, query_dim)
    assert jnp.allclose(out_self, ref_self, **TOL_F32), "f32 self-attention mismatch"

    out_cross = jax.block_until_ready(
        cross_attention_forward(x, prepped_f32, heads=heads, dim_head=dim_head, context=ctx))
    assert out_cross.shape == (B, N, query_dim)
    assert jnp.allclose(out_cross, ref_cross, **TOL_F32), "f32 cross-attention mismatch"

    # bf16 MXU operands (weights/q/k/v/probs bf16, f32 accumulation + f32 softmax):
    # tolerance relaxed for bf16 rounding (~0.4% per operand).
    prepped_bf16 = prepare_params(params, dim_head=dim_head, compute_dtype=jnp.bfloat16)
    TOL_BF16 = dict(atol=3e-2, rtol=3e-2)

    out_self_bf16 = jax.block_until_ready(
        cross_attention_forward(x, prepped_bf16, heads=heads, dim_head=dim_head, context=None))
    assert jnp.allclose(out_self_bf16, ref_self, **TOL_BF16), "bf16 self-attention mismatch"

    out_cross_bf16 = jax.block_until_ready(
        cross_attention_forward(x, prepped_bf16, heads=heads, dim_head=dim_head, context=ctx))
    assert jnp.allclose(out_cross_bf16, ref_cross, **TOL_BF16), "bf16 cross-attention mismatch"

    print("KERNEL_OK")
</pallas_src>

<mosaic_0001>
module attributes {stable_mosaic.version = 11 : i64} {
  func.func @_self_attn_kernel(%arg0: i32, %arg1: memref<2x8x32xf32, #tpu.memory_space<vmem>>, %arg2: memref<32x96xf32, #tpu.memory_space<vmem>>, %arg3: memref<32x32xf32, #tpu.memory_space<vmem>>, %arg4: memref<1x32xf32, #tpu.memory_space<vmem>>, %arg5: memref<16x32xf32, #tpu.memory_space<vmem>>) attributes {dimension_semantics = [#tpu.dimension_semantics<parallel>], iteration_bounds = array<i64: 1>, scalar_prefetch = 0 : i64, scratch_operands = 0 : i64, tpu.core_type = #tpu.core_type<tc>, window_params = [{transform_indices = @transform_0, window_bounds = array<i64: 2, 8, 32>}, {pipeline_mode = #tpu.pipeline_mode<synchronous>, transform_indices = @transform_1, window_bounds = array<i64: 32, 96>}, {pipeline_mode = #tpu.pipeline_mode<synchronous>, transform_indices = @transform_2, window_bounds = array<i64: 32, 32>}, {pipeline_mode = #tpu.pipeline_mode<synchronous>, transform_indices = @transform_3, window_bounds = array<i64: 1, 32>}, {transform_indices = @transform_4, window_bounds = array<i64: 16, 32>}]} {
    %c0 = arith.constant 0 : index
    %c0_0 = arith.constant 0 : index
    %0 = vector.load %arg2[%c0, %c0_0] : memref<32x96xf32, #tpu.memory_space<vmem>>, vector<32x96xf32>
    %c0_1 = arith.constant 0 : index
    %c0_2 = arith.constant 0 : index
    %1 = vector.load %arg3[%c0_1, %c0_2] : memref<32x32xf32, #tpu.memory_space<vmem>>, vector<32x32xf32>
    %c0_3 = arith.constant 0 : index
    %c0_4 = arith.constant 0 : index
    %2 = vector.load %arg4[%c0_3, %c0_4] : memref<1x32xf32, #tpu.memory_space<vmem>>, vector<1x32xf32>
    %c0_5 = arith.constant 0 : index
    %c0_6 = arith.constant 0 : index
    %c0_7 = arith.constant 0 : index
    %3 = vector.load %arg1[%c0_5, %c0_6, %c0_7] : memref<2x8x32xf32, #tpu.memory_space<vmem>>, vector<1x8x32xf32>
    %4 = vector.shape_cast %3 : vector<1x8x32xf32> to vector<8x32xf32>
    %cst = arith.constant dense<0.000000e+00> : vector<8x96xf32>
    %5 = tpu.matmul %4, %0, %cst {dimension_numbers = #tpu.dot_dimension_numbers<[1], [0], [0], [1], [0, 0, 1, 1], [], []>} : vector<8x32xf32>, vector<32x96xf32>, vector<8x96xf32> -> vector<8x96xf32>
    %6 = vector.extract_strided_slice %5 {offsets = [0, 0], sizes = [8, 32], strides = [1, 1]} : vector<8x96xf32> to vector<8x32xf32>
    %7 = vector.extract_strided_slice %5 {offsets = [0, 32], sizes = [8, 32], strides = [1, 1]} : vector<8x96xf32> to vector<8x32xf32>
    %8 = vector.extract_strided_slice %5 {offsets = [0, 64], sizes = [8, 32], strides = [1, 1]} : vector<8x96xf32> to vector<8x32xf32>
    %9 = vector.extract_strided_slice %6 {offsets = [0, 0], sizes = [8, 16], strides = [1, 1]} : vector<8x32xf32> to vector<8x16xf32>
    %10 = vector.extract_strided_slice %7 {offsets = [0, 0], sizes = [8, 16], strides = [1, 1]} : vector<8x32xf32> to vector<8x16xf32>
    %11 = vector.extract_strided_slice %8 {offsets = [0, 0], sizes = [8, 16], strides = [1, 1]} : vector<8x32xf32> to vector<8x16xf32>
    %cst_8 = arith.constant dense<0.000000e+00> : vector<8x8xf32>
    %12 = tpu.matmul %9, %10, %cst_8 {dimension_numbers = #tpu.dot_dimension_numbers<[1], [1], [0], [0], [0, 0, 1, 0], [], []>} : vector<8x16xf32>, vector<8x16xf32>, vector<8x8xf32> -> vector<8x8xf32>
    %cst_9 = arith.constant dense<0xFF800000> : vector<8xf32>
    %13 = vector.multi_reduction <maximumf>, %12, %cst_9 [1] : vector<8x8xf32> to vector<8xf32>
    %14 = vector.shape_cast %13 : vector<8xf32> to vector<8x1xf32>
    %15 = vector.broadcast %14 : vector<8x1xf32> to vector<8x8xf32>
    %16 = arith.subf %12, %15 : vector<8x8xf32>
    %17 = math.exp %16 : vector<8x8xf32>
    %cst_10 = arith.constant dense<0.000000e+00> : vector<8xf32>
    %18 = vector.multi_reduction <add>, %17, %cst_10 [1] : vector<8x8xf32> to vector<8xf32>
    %19 = vector.shape_cast %18 : vector<8xf32> to vector<8x1xf32>
    %20 = tpu.reciprocal %19 {approx = true} : vector<8x1xf32> -> vector<8x1xf32>
    %21 = vector.broadcast %20 : vector<8x1xf32> to vector<8x8xf32>
    %22 = arith.mulf %17, %21 : vector<8x8xf32>
    %cst_11 = arith.constant dense<0.000000e+00> : vector<8x16xf32>
    %23 = tpu.matmul %22, %11, %cst_11 {dimension_numbers = #tpu.dot_dimension_numbers<[1], [0], [0], [1], [0, 0, 1, 1], [], []>} : vector<8x8xf32>, vector<8x16xf32>, vector<8x16xf32> -> vector<8x16xf32>
    %24 = vector.extract_strided_slice %1 {offsets = [0, 0], sizes = [16, 32], strides = [1, 1]} : vector<32x32xf32> to vector<16x32xf32>
    %cst_12 = arith.constant dense<0.000000e+00> : vector<8x32xf32>
    %25 = tpu.matmul %23, %24, %cst_12 {dimension_numbers = #tpu.dot_dimension_numbers<[1], [0], [0], [1], [0, 0, 1, 1], [], []>} : vector<8x16xf32>, vector<16x32xf32>, vector<8x32xf32> -> vector<8x32xf32>
    %26 = vector.extract_strided_slice %6 {offsets = [0, 16], sizes = [8, 16], strides = [1, 1]} : vector<8x32xf32> to vector<8x16xf32>
    %27 = vector.extract_strided_slice %7 {offsets = [0, 16], sizes = [8, 16], strides = [1, 1]} : vector<8x32xf32> to vector<8x16xf32>
    %28 = vector.extract_strided_slice %8 {offsets = [0, 16], sizes = [8, 16], strides = [1, 1]} : vector<8x32xf32> to vector<8x16xf32>
    %cst_13 = arith.constant dense<0.000000e+00> : vector<8x8xf32>
    %29 = tpu.matmul %26, %27, %cst_13 {dimension_numbers = #tpu.dot_dimension_numbers<[1], [1], [0], [0], [0, 0, 1, 0], [], []>} : vector<8x16xf32>, vector<8x16xf32>, vector<8x8xf32> -> vector<8x8xf32>
    %cst_14 = arith.constant dense<0xFF800000> : vector<8xf32>
    %30 = vector.multi_reduction <maximumf>, %29, %cst_14 [1] : vector<8x8xf32> to vector<8xf32>
    %31 = vector.shape_cast %30 : vector<8xf32> to vector<8x1xf32>
    %32 = vector.broadcast %31 : vector<8x1xf32> to vector<8x8xf32>
    %33 = arith.subf %29, %32 : vector<8x8xf32>
    %34 = math.exp %33 : vector<8x8xf32>
    %cst_15 = arith.constant dense<0.000000e+00> : vector<8xf32>
    %35 = vector.multi_reduction <add>, %34, %cst_15 [1] : vector<8x8xf32> to vector<8xf32>
    %36 = vector.shape_cast %35 : vector<8xf32> to vector<8x1xf32>
    %37 = tpu.reciprocal %36 {approx = true} : vector<8x1xf32> -> vector<8x1xf32>
    %38 = vector.broadcast %37 : vector<8x1xf32> to vector<8x8xf32>
    %39 = arith.mulf %34, %38 : vector<8x8xf32>
    %cst_16 = arith.constant dense<0.000000e+00> : vector<8x16xf32>
    %40 = tpu.matmul %39, %28, %cst_16 {dimension_numbers = #tpu.dot_dimension_numbers<[1], [0], [0], [1], [0, 0, 1, 1], [], []>} : vector<8x8xf32>, vector<8x16xf32>, vector<8x16xf32> -> vector<8x16xf32>
    %41 = vector.extract_strided_slice %1 {offsets = [16, 0], sizes = [16, 32], strides = [1, 1]} : vector<32x32xf32> to vector<16x32xf32>
    %cst_17 = arith.constant dense<0.000000e+00> : vector<8x32xf32>
    %42 = tpu.matmul %40, %41, %cst_17 {dimension_numbers = #tpu.dot_dimension_numbers<[1], [0], [0], [1], [0, 0, 1, 1], [], []>} : vector<8x16xf32>, vector<16x32xf32>, vector<8x32xf32> -> vector<8x32xf32>
    %43 = arith.addf %25, %42 : vector<8x32xf32>
    %44 = vector.broadcast %2 : vector<1x32xf32> to vector<8x32xf32>
    %45 = arith.addf %43, %44 : vector<8x32xf32>
    %c0_18 = arith.constant 0 : index
    %c0_19 = arith.constant 0 : index
    %46 = vector.load %arg5[%c0_18, %c0_19] : memref<16x32xf32, #tpu.memory_space<vmem>>, vector<8x32xf32>
    tpu.vector_store %arg5[%c0_18, %c0_19], %45 {strides = array<i32>} : memref<16x32xf32, #tpu.memory_space<vmem>>, vector<8x32xf32>,
    %c1 = arith.constant 1 : index
    %c0_20 = arith.constant 0 : index
    %c0_21 = arith.constant 0 : index
    %47 = vector.load %arg1[%c1, %c0_20, %c0_21] : memref<2x8x32xf32, #tpu.memory_space<vmem>>, vector<1x8x32xf32>
    %48 = vector.shape_cast %47 : vector<1x8x32xf32> to vector<8x32xf32>
    %cst_22 = arith.constant dense<0.000000e+00> : vector<8x96xf32>
    %49 = tpu.matmul %48, %0, %cst_22 {dimension_numbers = #tpu.dot_dimension_numbers<[1], [0], [0], [1], [0, 0, 1, 1], [], []>} : vector<8x32xf32>, vector<32x96xf32>, vector<8x96xf32> -> vector<8x96xf32>
    %50 = vector.extract_strided_slice %49 {offsets = [0, 0], sizes = [8, 32], strides = [1, 1]} : vector<8x96xf32> to vector<8x32xf32>
    %51 = vector.extract_strided_slice %49 {offsets = [0, 32], sizes = [8, 32], strides = [1, 1]} : vector<8x96xf32> to vector<8x32xf32>
    %52 = vector.extract_strided_slice %49 {offsets = [0, 64], sizes = [8, 32], strides = [1, 1]} : vector<8x96xf32> to vector<8x32xf32>
    %53 = vector.extract_strided_slice %50 {offsets = [0, 0], sizes = [8, 16], strides = [1, 1]} : vector<8x32xf32> to vector<8x16xf32>
    %54 = vector.extract_strided_slice %51 {offsets = [0, 0], sizes = [8, 16], strides = [1, 1]} : vector<8x32xf32> to vector<8x16xf32>
    %55 = vector.extract_strided_slice %52 {offsets = [0, 0], sizes = [8, 16], strides = [1, 1]} : vector<8x32xf32> to vector<8x16xf32>
    %cst_23 = arith.constant dense<0.000000e+00> : vector<8x8xf32>
    %56 = tpu.matmul %53, %54, %cst_23 {dimension_numbers = #tpu.dot_dimension_numbers<[1], [1], [0], [0], [0, 0, 1, 0], [], []>} : vector<8x16xf32>, vector<8x16xf32>, vector<8x8xf32> -> vector<8x8xf32>
    %cst_24 = arith.constant dense<0xFF800000> : vector<8xf32>
    %57 = vector.multi_reduction <maximumf>, %56, %cst_24 [1] : vector<8x8xf32> to vector<8xf32>
    %58 = vector.shape_cast %57 : vector<8xf32> to vector<8x1xf32>
    %59 = vector.broadcast %58 : vector<8x1xf32> to vector<8x8xf32>
    %60 = arith.subf %56, %59 : vector<8x8xf32>
    %61 = math.exp %60 : vector<8x8xf32>
    %cst_25 = arith.constant dense<0.000000e+00> : vector<8xf32>
    %62 = vector.multi_reduction <add>, %61, %cst_25 [1] : vector<8x8xf32> to vector<8xf32>
    %63 = vector.shape_cast %62 : vector<8xf32> to vector<8x1xf32>
    %64 = tpu.reciprocal %63 {approx = true} : vector<8x1xf32> -> vector<8x1xf32>
    %65 = vector.broadcast %64 : vector<8x1xf32> to vector<8x8xf32>
    %66 = arith.mulf %61, %65 : vector<8x8xf32>
    %cst_26 = arith.constant dense<0.000000e+00> : vector<8x16xf32>
    %67 = tpu.matmul %66, %55, %cst_26 {dimension_numbers = #tpu.dot_dimension_numbers<[1], [0], [0], [1], [0, 0, 1, 1], [], []>} : vector<8x8xf32>, vector<8x16xf32>, vector<8x16xf32> -> vector<8x16xf32>
    %68 = vector.extract_strided_slice %1 {offsets = [0, 0], sizes = [16, 32], strides = [1, 1]} : vector<32x32xf32> to vector<16x32xf32>
    %cst_27 = arith.constant dense<0.000000e+00> : vector<8x32xf32>
    %69 = tpu.matmul %67, %68, %cst_27 {dimension_numbers = #tpu.dot_dimension_numbers<[1], [0], [0], [1], [0, 0, 1, 1], [], []>} : vector<8x16xf32>, vector<16x32xf32>, vector<8x32xf32> -> vector<8x32xf32>
    %70 = vector.extract_strided_slice %50 {offsets = [0, 16], sizes = [8, 16], strides = [1, 1]} : vector<8x32xf32> to vector<8x16xf32>
    %71 = vector.extract_strided_slice %51 {offsets = [0, 16], sizes = [8, 16], strides = [1, 1]} : vector<8x32xf32> to vector<8x16xf32>
    %72 = vector.extract_strided_slice %52 {offsets = [0, 16], sizes = [8, 16], strides = [1, 1]} : vector<8x32xf32> to vector<8x16xf32>
    %cst_28 = arith.constant dense<0.000000e+00> : vector<8x8xf32>
    %73 = tpu.matmul %70, %71, %cst_28 {dimension_numbers = #tpu.dot_dimension_numbers<[1], [1], [0], [0], [0, 0, 1, 0], [], []>} : vector<8x16xf32>, vector<8x16xf32>, vector<8x8xf32> -> vector<8x8xf32>
    %cst_29 = arith.constant dense<0xFF800000> : vector<8xf32>
    %74 = vector.multi_reduction <maximumf>, %73, %cst_29 [1] : vector<8x8xf32> to vector<8xf32>
    %75 = vector.shape_cast %74 : vector<8xf32> to vector<8x1xf32>
    %76 = vector.broadcast %75 : vector<8x1xf32> to vector<8x8xf32>
    %77 = arith.subf %73, %76 : vector<8x8xf32>
    %78 = math.exp %77 : vector<8x8xf32>
    %cst_30 = arith.constant dense<0.000000e+00> : vector<8xf32>
    %79 = vector.multi_reduction <add>, %78, %cst_30 [1] : vector<8x8xf32> to vector<8xf32>
    %80 = vector.shape_cast %79 : vector<8xf32> to vector<8x1xf32>
    %81 = tpu.reciprocal %80 {approx = true} : vector<8x1xf32> -> vector<8x1xf32>
    %82 = vector.broadcast %81 : vector<8x1xf32> to vector<8x8xf32>
    %83 = arith.mulf %78, %82 : vector<8x8xf32>
    %cst_31 = arith.constant dense<0.000000e+00> : vector<8x16xf32>
    %84 = tpu.matmul %83, %72, %cst_31 {dimension_numbers = #tpu.dot_dimension_numbers<[1], [0], [0], [1], [0, 0, 1, 1], [], []>} : vector<8x8xf32>, vector<8x16xf32>, vector<8x16xf32> -> vector<8x16xf32>
    %85 = vector.extract_strided_slice %1 {offsets = [16, 0], sizes = [16, 32], strides = [1, 1]} : vector<32x32xf32> to vector<16x32xf32>
    %cst_32 = arith.constant dense<0.000000e+00> : vector<8x32xf32>
    %86 = tpu.matmul %84, %85, %cst_32 {dimension_numbers = #tpu.dot_dimension_numbers<[1], [0], [0], [1], [0, 0, 1, 1], [], []>} : vector<8x16xf32>, vector<16x32xf32>, vector<8x32xf32> -> vector<8x32xf32>
    %87 = arith.addf %69, %86 : vector<8x32xf32>
    %88 = vector.broadcast %2 : vector<1x32xf32> to vector<8x32xf32>
    %89 = arith.addf %87, %88 : vector<8x32xf32>
    %c8 = arith.constant 8 : index
    %c0_33 = arith.constant 0 : index
    %90 = vector.load %arg5[%c8, %c0_33] : memref<16x32xf32, #tpu.memory_space<vmem>>, vector<8x32xf32>
    tpu.vector_store %arg5[%c8, %c0_33], %89 {strides = array<i32>} : memref<16x32xf32, #tpu.memory_space<vmem>>, vector<8x32xf32>,
    return
  }
  func.func @transform_0(%arg0: i32) -> (i32, i32, i32) {
    %c0_i32 = arith.constant 0 : i32
    %c0_i32_0 = arith.constant 0 : i32
    %c0_i32_1 = arith.constant 0 : i32
    return %arg0, %c0_i32, %c0_i32_0 : i32, i32, i32
  }
  func.func @transform_1(%arg0: i32) -> (i32, i32) {
    %c0_i32 = arith.constant 0 : i32
    %c0_i32_0 = arith.constant 0 : i32
    %c0_i32_1 = arith.constant 0 : i32
    return %c0_i32, %c0_i32_0 : i32, i32
  }
  func.func @transform_2(%arg0: i32) -> (i32, i32) {
    %c0_i32 = arith.constant 0 : i32
    %c0_i32_0 = arith.constant 0 : i32
    %c0_i32_1 = arith.constant 0 : i32
    return %c0_i32, %c0_i32_0 : i32, i32
  }
  func.func @transform_3(%arg0: i32) -> (i32, i32) {
    %c0_i32 = arith.constant 0 : i32
    %c0_i32_0 = arith.constant 0 : i32
    %c0_i32_1 = arith.constant 0 : i32
    return %c0_i32, %c0_i32_0 : i32, i32
  }
  func.func @transform_4(%arg0: i32) -> (i32, i32) {
    %c0_i32 = arith.constant 0 : i32
    %c0_i32_0 = arith.constant 0 : i32
    return %arg0, %c0_i32 : i32, i32
  }
}

</mosaic_0001>

<llo_original>
// kernel: tpu_custom_call.1
$region0: #{tpu_custom_call.1}
  #allocation0 [shape = 'u32[]', space=smem, size = 0x4, offset = 0x4, fixed_abs, tag = 'smem constant byte address 0x4 - core index']
  #allocation1 [shape = 'u32[144,128]{1,0:T(1,128)}', space=vmem, size = 0x12000, scoped, tag = 'internal scratch']
  %s0 = inlined_call_operand.hbm [shape: f32[2,8,32], index: 0, kind: input, shape index: {}]
  %s1 = inlined_call_operand.hbm [shape: f32[32,96], index: 1, kind: input, shape index: {}]
  %s2 = inlined_call_operand.hbm [shape: f32[32,32], index: 2, kind: input, shape index: {}]
  %s3 = inlined_call_operand.vmem [shape: f32[1,32], index: 3, kind: input, shape index: {}]
  %s4 = inlined_call_operand.hbm [shape: f32[16,32], index: 4, kind: output, shape index: {}]
  %s5 = sld [smem:[#allocation0]]
  $region38: #{tpu_custom_call.1} parent=0
    _
  %s7 = ssub.s32 1, %s5
  %s8 = scalar_select 0, %s7, %s5
  $region1: #{tpu_custom_call.1} parent=0
    #allocation2 [shape = 'u8[8192]{0}', space=vmem, size = 0x2000, scoped, tag = 'input window, operand 0, single buffered']
    #allocation3 [shape = 's32[1]{0}', space=sflag, size = 0x4, scoped, tag = 'scoped memory for tpu_custom_call.1']
    #allocation4 [shape = 's32[1]{0}', space=sflag, size = 0x4, scoped, tag = 'scoped memory for tpu_custom_call.1']
    #allocation5 [shape = 'u8[16384]{0}', space=vmem, size = 0x4000, scoped, tag = 'input window, operand 1, single buffered']
    #allocation6 [shape = 's32[1]{0}', space=sflag, size = 0x4, scoped, tag = 'scoped memory for tpu_custom_call.1']
    #allocation7 [shape = 'u8[16384]{0}', space=vmem, size = 0x4000, scoped, tag = 'input window, operand 2, single buffered']
    #allocation8 [shape = 'u8[8192]{0}', space=vmem, size = 0x2000, scoped, tag = 'output window, operand 0, single buffered']
    %9 = vsyncpa [#allocation3], 0
    %10 = vsyncpa [#allocation6], 0
    %11 = vsyncpa [#allocation4], 0
    // Predicated region
    $region2: #{tpu_custom_call.1} parent=1 // pred_check
      _
    $region3: #{tpu_custom_call.1} parent=1 // pred_check_branch
      %13 = sbr.rel (0) target = $region5
    $region4: #{tpu_custom_call.1} parent=1 // pred_region
      %s15 = ssub.s32 256, 256
      %16 = vsyncadd [#allocation3], %s15
      %s17 = sshll.u32 [#allocation2], 4
      %s18 = int_to_ptr.vmem [resolvable:$true] %s17
      %23 = dma.hbm_to_vmem [thread:$0]  %s0, 256, %s18, [#allocation3], 128, 128, 8
    $region5: #{tpu_custom_call.1} parent=1 // pred_fallthru
      _
    // Predicated region
    $region6: #{tpu_custom_call.1} parent=1 // pred_check
      _
    $region7: #{tpu_custom_call.1} parent=1 // pred_check_branch
      %25 = sbr.rel (0) target = $region9
    $region8: #{tpu_custom_call.1} parent=1 // pred_region
      %s27 = ssub.s32 512, 512
      %28 = vsyncadd [#allocation6], %s27
      %s29 = sshll.u32 [#allocation5], 4
      %s30 = int_to_ptr.vmem [resolvable:$true] %s29
      %35 = dma.hbm_to_vmem [thread:$0]  %s1, 512, %s30, [#allocation6], 128, 128, 8
    $region9: #{tpu_custom_call.1} parent=1 // pred_fallthru
      _
    // Predicated region
    $region10: #{tpu_custom_call.1} parent=1 // pred_check
      _
    $region11: #{tpu_custom_call.1} parent=1 // pred_check_branch
      %37 = sbr.rel (0) target = $region13
    $region12: #{tpu_custom_call.1} parent=1 // pred_region
      %s39 = ssub.s32 512, 512
      %40 = vsyncadd [#allocation6], %s39
      %s41 = sshll.u32 [#allocation7], 4
      %s42 = int_to_ptr.vmem [resolvable:$true] %s41
      %47 = dma.hbm_to_vmem [thread:$0]  %s2, 512, %s42, [#allocation6], 128, 128, 8
    $region13: #{tpu_custom_call.1} parent=1 // pred_fallthru
      _
    // Predicated region
    $region14: #{tpu_custom_call.1} parent=1 // pred_check
      _
    $region15: #{tpu_custom_call.1} parent=1 // pred_check_branch
      %49 = sbr.rel (0) target = $region17
    $region16: #{tpu_custom_call.1} parent=1 // pred_region
      _
    $region17: #{tpu_custom_call.1} parent=1 // pred_fallthru
      _
    // Predicated region
    $region18: #{tpu_custom_call.1} parent=1 // pred_check
      _
    $region19: #{tpu_custom_call.1} parent=1 // pred_check_branch
      %51 = sbr.rel (0) target = $region21
    $region20: #{tpu_custom_call.1} parent=1 // pred_region
      %52 = dma.done [#allocation3], 256
    $region21: #{tpu_custom_call.1} parent=1 // pred_fallthru
      _
    // Predicated region
    $region22: #{tpu_custom_call.1} parent=1 // pred_check
      _
    $region23: #{tpu_custom_call.1} parent=1 // pred_check_branch
      %54 = sbr.rel (0) target = $region25
    $region24: #{tpu_custom_call.1} parent=1 // pred_region
      %55 = dma.done [#allocation6], 512
    $region25: #{tpu_custom_call.1} parent=1 // pred_fallthru
      _
    // Predicated region
    $region26: #{tpu_custom_call.1} parent=1 // pred_check
      _
    $region27: #{tpu_custom_call.1} parent=1 // pred_check_branch
      %57 = sbr.rel (0) target = $region29
    $region28: #{tpu_custom_call.1} parent=1 // pred_region
      %58 = dma.done [#allocation6], 512
    $region29: #{tpu_custom_call.1} parent=1 // pred_fallthru
      _
    %v59 = vld [vmem:[#allocation5] sm:$0xff]
    %v60 = vld [vmem:[#allocation5 + $0x8] sm:$0xff]
    %v61 = vld [vmem:[#allocation5 + $0x10] sm:$0xff]
    %v62 = vld [vmem:[#allocation5 + $0x18] sm:$0xff]
    %v63 = vld [vmem:[#allocation7] sm:$0xff]
    %v64 = vld [vmem:[#allocation7 + $0x8] sm:$0xff]
    %v65 = vld [vmem:[#allocation7 + $0x10] sm:$0xff]
    %v66 = vld [vmem:[#allocation7 + $0x18] sm:$0xff]
    %v67 = vld [vmem:[%s3] sm:$0x1]
    %v68 = vld [vmem:[#allocation2] sm:$0xff]
    %vm69 = vcmask 261120
    %v71 = vsel %vm69, %v68, 0
    %73 = vmatprep.subr.mxu0 0.0
    %74 = vmatpush1.msra.mxu0 %v59
    %75 = vmatprep.subr.mxu0 0.0
    %76 = vmatpush1.msra.mxu0 %v60
    %77 = vmatprep.subr.mxu0 0.0
    %78 = vmatpush1.msra.mxu0 %v61
    %79 = vmatprep.subr.mxu0 0.0
    %80 = vmatpush1.msra.mxu0 %v62
    %81 = vmatprep.subr.mxu0 0.0
    %82 = vmatpush1.msra.mxu0 0.0
    %83 = vmatprep.subr.mxu0 0.0
    %84 = vmatpush1.msra.mxu0 0.0
    %85 = vmatprep.subr.mxu0 0.0
    %86 = vmatpush1.msra.mxu0 0.0
    %87 = vmatprep.subr.mxu0 0.0
    %88 = vmatpush1.msra.mxu0 0.0
    %89 = vmatprep.subr.mxu0 0.0
    %90 = vmatpush1.msra.mxu0 0.0
    %91 = vmatprep.subr.mxu0 0.0
    %92 = vmatpush1.msra.mxu0 0.0
    %93 = vmatprep.subr.mxu0 0.0
    %94 = vmatpush1.msra.mxu0 0.0
    %95 = vmatprep.subr.mxu0 0.0
    %96 = vmatpush1.msra.mxu0 0.0
    %97 = vmatprep.subr.mxu0 0.0
    %98 = vmatpush1.msra.mxu0 0.0
    %99 = vmatprep.subr.mxu0 0.0
    %100 = vmatpush1.msra.mxu0 0.0
    %101 = vmatprep.subr.mxu0 0.0
    %102 = vmatpush1.msra.mxu0 0.0
    %103 = vmatprep.subr.mxu0 0.0
    %104 = vmatpush1.msra.mxu0 0.0
    %105 = vmatprep.subr.mxu0 0.0
    %106 = vmatpush1.msra.mxu0 0.0
    %107 = vmatprep.subr.mxu0 0.0
    %108 = vmatpush1.msra.mxu0 0.0
    %109 = vmatprep.subr.mxu0 0.0
    %110 = vmatpush1.msra.mxu0 0.0
    %111 = vmatprep.subr.mxu0 0.0
    %112 = vmatpush1.msra.mxu0 0.0
    %113 = vmatprep.subr.mxu0 0.0
    %114 = vmatpush1.msra.mxu0 0.0
    %115 = vmatprep.subr.mxu0 0.0
    %116 = vmatpush1.msra.mxu0 0.0
    %117 = vmatprep.subr.mxu0 0.0
    %118 = vmatpush1.msra.mxu0 0.0
    %119 = vmatprep.subr.mxu0 0.0
    %120 = vmatpush1.msra.mxu0 0.0
    %121 = vmatprep.subr.mxu0 0.0
    %122 = vmatpush1.msra.mxu0 0.0
    %123 = vmatprep.subr.mxu0 0.0
    %124 = vmatpush1.msra.mxu0 0.0
    %125 = vmatprep.subr.mxu0 0.0
    %126 = vmatpush1.msra.mxu0 0.0
    %127 = vmatprep.subr.mxu0 0.0
    %128 = vmatpush1.msra.mxu0 0.0
    %129 = vmatprep.subr.mxu0 0.0
    %130 = vmatpush1.msra.mxu0 0.0
    %131 = vmatprep.subr.mxu0 0.0
    %132 = vmatpush1.msra.mxu0 0.0
    %133 = vmatprep.subr.mxu0 0.0
    %134 = vmatpush1.msra.mxu0 0.0
    %135 = vmatprep.subr.mxu0 0.0
    %136 = vmatpush1.msra.mxu0 0.0
    %137 = vmatprep.mubr.f32.mxu0 0.0
    %138 = vmatmul.mubr.f32.gmra.mrb[0].mxu0 %v71
    %v139 = vpop.f32.mrb[0].mxu0
    %v140 = vadd.f32 0.0, %v139
    %v141 = vpop.f32.mrb[0].mxu0
    %142 = vdwg.mxu0
    %144 = vrot.lane.b32.xlu0 %v140, 96
    %v145 = vpop.permute.xlu0 %144
    %vm146 = vcmask 130048
    %v147 = vsel %vm146, %v140, 0
    %v149 = vsel %vm146, %v145, 0
    %151 = vmatprep.subr.mxu0 0.0
    %152 = vmatpush1.xpose.msra.mxu0 %v149
    %153 = vmatprep.subr.mxu0 0.0
    %154 = vmatpush1.xpose.msra.mxu0 0.0
    %155 = vmatprep.subr.mxu0 0.0
    %156 = vmatpush1.xpose.msra.mxu0 0.0
    %157 = vmatprep.subr.mxu0 0.0
    %158 = vmatpush1.xpose.msra.mxu0 0.0
    %159 = vmatprep.subr.mxu0 0.0
    %160 = vmatpush1.xpose.msra.mxu0 0.0
    %161 = vmatprep.subr.mxu0 0.0
    %162 = vmatpush1.xpose.msra.mxu0 0.0
    %163 = vmatprep.subr.mxu0 0.0
    %164 = vmatpush1.xpose.msra.mxu0 0.0
    %165 = vmatprep.subr.mxu0 0.0
    %166 = vmatpush1.xpose.msra.mxu0 0.0
    %167 = vmatprep.subr.mxu0 0.0
    %168 = vmatpush1.xpose.msra.mxu0 0.0
    %169 = vmatprep.subr.mxu0 0.0
    %170 = vmatpush1.xpose.msra.mxu0 0.0
    %171 = vmatprep.subr.mxu0 0.0
    %172 = vmatpush1.xpose.msra.mxu0 0.0
    %173 = vmatprep.subr.mxu0 0.0
    %174 = vmatpush1.xpose.msra.mxu0 0.0
    %175 = vmatprep.subr.mxu0 0.0
    %176 = vmatpush1.xpose.msra.mxu0 0.0
    %177 = vmatprep.subr.mxu0 0.0
    %178 = vmatpush1.xpose.msra.mxu0 0.0
    %179 = vmatprep.subr.mxu0 0.0
    %180 = vmatpush1.xpose.msra.mxu0 0.0
    %181 = vmatprep.subr.mxu0 0.0
    %182 = vmatpush1.xpose.msra.mxu0 0.0
    %183 = vmatprep.subr.mxu0 0.0
    %184 = vmatpush1.xpose.msra.mxu0 0.0
    %185 = vmatprep.subr.mxu0 0.0
    %186 = vmatpush1.xpose.msra.mxu0 0.0
    %187 = vmatprep.subr.mxu0 0.0
    %188 = vmatpush1.xpose.msra.mxu0 0.0
    %189 = vmatprep.subr.mxu0 0.0
    %190 = vmatpush1.xpose.msra.mxu0 0.0
    %191 = vmatprep.subr.mxu0 0.0
    %192 = vmatpush1.xpose.msra.mxu0 0.0
    %193 = vmatprep.subr.mxu0 0.0
    %194 = vmatpush1.xpose.msra.mxu0 0.0
    %195 = vmatprep.subr.mxu0 0.0
    %196 = vmatpush1.xpose.msra.mxu0 0.0
    %197 = vmatprep.subr.mxu0 0.0
    %198 = vmatpush1.xpose.msra.mxu0 0.0
    %199 = vmatprep.subr.mxu0 0.0
    %200 = vmatpush1.xpose.msra.mxu0 0.0
    %201 = vmatprep.subr.mxu0 0.0
    %202 = vmatpush1.xpose.msra.mxu0 0.0
    %203 = vmatprep.subr.mxu0 0.0
    %204 = vmatpush1.xpose.msra.mxu0 0.0
    %205 = vmatprep.subr.mxu0 0.0
    %206 = vmatpush1.xpose.msra.mxu0 0.0
    %207 = vmatprep.subr.mxu0 0.0
    %208 = vmatpush1.xpose.msra.mxu0 0.0
    %209 = vmatprep.subr.mxu0 0.0
    %210 = vmatpush1.xpose.msra.mxu0 0.0
    %211 = vmatprep.subr.mxu0 0.0
    %212 = vmatpush1.xpose.msra.mxu0 0.0
    %213 = vmatprep.subr.mxu0 0.0
    %214 = vmatpush1.xpose.msra.mxu0 0.0
    %215 = vmatprep.mubr.f32.mxu0 0.0
    %216 = vmatmul.mubr.f32.gmra.mrb[0].mxu0 %v147
    %v217 = vpop.f32.mrb[0].mxu0
    %v218 = vadd.f32 0.0, %v217
    %v219 = vpop.f32.mrb[0].mxu0
    %220 = vdwg.mxu0
    %vm221 = vcmask 64512
    %v222 = vsel %vm221, %v218, -inf
    %223 = vmax.xlane.f32.xlu0 %v222
    %v224 = vpop.xlane.xlu0 %223
    %v225 = vsub.f32 %v218, %v224
    %v226 = vmul.f32 %v225, 1.442695
    %v227 = vpow.pop %v226
    %v228 = vsel %vm221, %v227, 0.0
    %229 = vadd.xlane.f32.xlu0 %v228
    %v230 = vpop.xlane.xlu0 %229
    %v231 = vrcp.pop %v230
    %v232 = vmul.f32 %v227, %v231
    %233 = vrot.lane.b32.xlu0 %v140, 64
    %v234 = vpop.permute.xlu0 %233
    %v237 = vsel %vm221, %v232, 0
    %239 = vmatprep.subr.mxu0 0.0
    %240 = vmatpush1.msra.mxu0 %v234
    %241 = vmatprep.subr.mxu0 0.0
    %242 = vmatpush1.msra.mxu0 0.0
    %243 = vmatprep.subr.mxu0 0.0
    %244 = vmatpush1.msra.mxu0 0.0
    %245 = vmatprep.subr.mxu0 0.0
    %246 = vmatpush1.msra.mxu0 0.0
    %247 = vmatprep.subr.mxu0 0.0
    %248 = vmatpush1.msra.mxu0 0.0
    %249 = vmatprep.subr.mxu0 0.0
    %250 = vmatpush1.msra.mxu0 0.0
    %251 = vmatprep.subr.mxu0 0.0
    %252 = vmatpush1.msra.mxu0 0.0
    %253 = vmatprep.subr.mxu0 0.0
    %254 = vmatpush1.msra.mxu0 0.0
    %255 = vmatprep.subr.mxu0 0.0
    %256 = vmatpush1.msra.mxu0 0.0
    %257 = vmatprep.subr.mxu0 0.0
    %258 = vmatpush1.msra.mxu0 0.0
    %259 = vmatprep.subr.mxu0 0.0
    %260 = vmatpush1.msra.mxu0 0.0
    %261 = vmatprep.subr.mxu0 0.0
    %262 = vmatpush1.msra.mxu0 0.0
    %263 = vmatprep.subr.mxu0 0.0
    %264 = vmatpush1.msra.mxu0 0.0
    %265 = vmatprep.subr.mxu0 0.0
    %266 = vmatpush1.msra.mxu0 0.0
    %267 = vmatprep.subr.mxu0 0.0
    %268 = vmatpush1.msra.mxu0 0.0
    %269 = vmatprep.subr.mxu0 0.0
    %270 = vmatpush1.msra.mxu0 0.0
    %271 = vmatprep.subr.mxu0 0.0
    %272 = vmatpush1.msra.mxu0 0.0
    %273 = vmatprep.subr.mxu0 0.0
    %274 = vmatpush1.msra.mxu0 0.0
    %275 = vmatprep.subr.mxu0 0.0
    %276 = vmatpush1.msra.mxu0 0.0
    %277 = vmatprep.subr.mxu0 0.0
    %278 = vmatpush1.msra.mxu0 0.0
    %279 = vmatprep.subr.mxu0 0.0
    %280 = vmatpush1.msra.mxu0 0.0
    %281 = vmatprep.subr.mxu0 0.0
    %282 = vmatpush1.msra.mxu0 0.0
    %283 = vmatprep.subr.mxu0 0.0
    %284 = vmatpush1.msra.mxu0 0.0
    %285 = vmatprep.subr.mxu0 0.0
    %286 = vmatpush1.msra.mxu0 0.0
    %287 = vmatprep.subr.mxu0 0.0
    %288 = vmatpush1.msra.mxu0 0.0
    %289 = vmatprep.subr.mxu0 0.0
    %290 = vmatpush1.msra.mxu0 0.0
    %291 = vmatprep.subr.mxu0 0.0
    %292 = vmatpush1.msra.mxu0 0.0
    %293 = vmatprep.subr.mxu0 0.0
    %294 = vmatpush1.msra.mxu0 0.0
    %295 = vmatprep.subr.mxu0 0.0
    %296 = vmatpush1.msra.mxu0 0.0
    %297 = vmatprep.subr.mxu0 0.0
    %298 = vmatpush1.msra.mxu0 0.0
    %299 = vmatprep.subr.mxu0 0.0
    %300 = vmatpush1.msra.mxu0 0.0
    %301 = vmatprep.subr.mxu0 0.0
    %302 = vmatpush1.msra.mxu0 0.0
    %303 = vmatprep.mubr.f32.mxu0 0.0
    %304 = vmatmul.mubr.f32.gmra.mrb[0].mxu0 %v237
    %v305 = vpop.f32.mrb[0].mxu0
    %v306 = vadd.f32 0.0, %v305
    %v307 = vpop.f32.mrb[0].mxu0
    %308 = vdwg.mxu0
    %309 = vrot.lane.b32.xlu0 %v140, 112
    %v310 = vpop.permute.xlu0 %309
    %311 = vrot.lane.b32.xlu0 %v140, 80
    %v312 = vpop.permute.xlu0 %311
    %v313 = vsel %vm146, %v310, 0
    %v315 = vsel %vm146, %v312, 0
    %317 = vmatprep.subr.mxu0 0.0
    %318 = vmatpush1.xpose.msra.mxu0 %v315
    %319 = vmatprep.subr.mxu0 0.0
    %320 = vmatpush1.xpose.msra.mxu0 0.0
    %321 = vmatprep.subr.mxu0 0.0
    %322 = vmatpush1.xpose.msra.mxu0 0.0
    %323 = vmatprep.subr.mxu0 0.0
    %324 = vmatpush1.xpose.msra.mxu0 0.0
    %325 = vmatprep.subr.mxu0 0.0
    %326 = vmatpush1.xpose.msra.mxu0 0.0
    %327 = vmatprep.subr.mxu0 0.0
    %328 = vmatpush1.xpose.msra.mxu0 0.0
    %329 = vmatprep.subr.mxu0 0.0
    %330 = vmatpush1.xpose.msra.mxu0 0.0
    %331 = vmatprep.subr.mxu0 0.0
    %332 = vmatpush1.xpose.msra.mxu0 0.0
    %333 = vmatprep.subr.mxu0 0.0
    %334 = vmatpush1.xpose.msra.mxu0 0.0
    %335 = vmatprep.subr.mxu0 0.0
    %336 = vmatpush1.xpose.msra.mxu0 0.0
    %337 = vmatprep.subr.mxu0 0.0
    %338 = vmatpush1.xpose.msra.mxu0 0.0
    %339 = vmatprep.subr.mxu0 0.0
    %340 = vmatpush1.xpose.msra.mxu0 0.0
    %341 = vmatprep.subr.mxu0 0.0
    %342 = vmatpush1.xpose.msra.mxu0 0.0
    %343 = vmatprep.subr.mxu0 0.0
    %344 = vmatpush1.xpose.msra.mxu0 0.0
    %345 = vmatprep.subr.mxu0 0.0
    %346 = vmatpush1.xpose.msra.mxu0 0.0
    %347 = vmatprep.subr.mxu0 0.0
    %348 = vmatpush1.xpose.msra.mxu0 0.0
    %349 = vmatprep.subr.mxu0 0.0
    %350 = vmatpush1.xpose.msra.mxu0 0.0
    %351 = vmatprep.subr.mxu0 0.0
    %352 = vmatpush1.xpose.msra.mxu0 0.0
    %353 = vmatprep.subr.mxu0 0.0
    %354 = vmatpush1.xpose.msra.mxu0 0.0
    %355 = vmatprep.subr.mxu0 0.0
    %356 = vmatpush1.xpose.msra.mxu0 0.0
    %357 = vmatprep.subr.mxu0 0.0
    %358 = vmatpush1.xpose.msra.mxu0 0.0
    %359 = vmatprep.subr.mxu0 0.0
    %360 = vmatpush1.xpose.msra.mxu0 0.0
    %361 = vmatprep.subr.mxu0 0.0
    %362 = vmatpush1.xpose.msra.mxu0 0.0
    %363 = vmatprep.subr.mxu0 0.0
    %364 = vmatpush1.xpose.msra.mxu0 0.0
    %365 = vmatprep.subr.mxu0 0.0
    %366 = vmatpush1.xpose.msra.mxu0 0.0
    %367 = vmatprep.subr.mxu0 0.0
    %368 = vmatpush1.xpose.msra.mxu0 0.0
    %369 = vmatprep.subr.mxu0 0.0
    %370 = vmatpush1.xpose.msra.mxu0 0.0
    %371 = vmatprep.subr.mxu0 0.0
    %372 = vmatpush1.xpose.msra.mxu0 0.0
    %373 = vmatprep.subr.mxu0 0.0
    %374 = vmatpush1.xpose.msra.mxu0 0.0
    %375 = vmatprep.subr.mxu0 0.0
    %376 = vmatpush1.xpose.msra.mxu0 0.0
    %377 = vmatprep.subr.mxu0 0.0
    %378 = vmatpush1.xpose.msra.mxu0 0.0
    %379 = vmatprep.subr.mxu0 0.0
    %380 = vmatpush1.xpose.msra.mxu0 0.0
    %381 = vmatprep.mubr.f32.mxu0 0.0
    %382 = vmatmul.mubr.f32.gmra.mrb[0].mxu0 %v313
    %v383 = vpop.f32.mrb[0].mxu0
    %v384 = vadd.f32 0.0, %v383
    %v385 = vpop.f32.mrb[0].mxu0
    %386 = vdwg.mxu0
    %v387 = vsel %vm221, %v384, -inf
    %388 = vmax.xlane.f32.xlu0 %v387
    %v389 = vpop.xlane.xlu0 %388
    %v390 = vsub.f32 %v384, %v389
    %v391 = vmul.f32 %v390, 1.442695
    %v392 = vpow.pop %v391
    %v393 = vsel %vm221, %v392, 0.0
    %394 = vadd.xlane.f32.xlu0 %v393
    %v395 = vpop.xlane.xlu0 %394
    %v396 = vrcp.pop %v395
    %v397 = vmul.f32 %v392, %v396
    %398 = vrot.lane.b32.xlu0 %v140, 48
    %v399 = vpop.permute.xlu0 %398
    %v402 = vsel %vm221, %v397, 0
    %404 = vmatprep.subr.mxu0 0.0
    %405 = vmatpush1.msra.mxu0 %v399
    %406 = vmatprep.subr.mxu0 0.0
    %407 = vmatpush1.msra.mxu0 0.0
    %408 = vmatprep.subr.mxu0 0.0
    %409 = vmatpush1.msra.mxu0 0.0
    %410 = vmatprep.subr.mxu0 0.0
    %411 = vmatpush1.msra.mxu0 0.0
    %412 = vmatprep.subr.mxu0 0.0
    %413 = vmatpush1.msra.mxu0 0.0
    %414 = vmatprep.subr.mxu0 0.0
    %415 = vmatpush1.msra.mxu0 0.0
    %416 = vmatprep.subr.mxu0 0.0
    %417 = vmatpush1.msra.mxu0 0.0
    %418 = vmatprep.subr.mxu0 0.0
    %419 = vmatpush1.msra.mxu0 0.0
    %420 = vmatprep.subr.mxu0 0.0
    %421 = vmatpush1.msra.mxu0 0.0
    %422 = vmatprep.subr.mxu0 0.0
    %423 = vmatpush1.msra.mxu0 0.0
    %424 = vmatprep.subr.mxu0 0.0
    %425 = vmatpush1.msra.mxu0 0.0
    %426 = vmatprep.subr.mxu0 0.0
    %427 = vmatpush1.msra.mxu0 0.0
    %428 = vmatprep.subr.mxu0 0.0
    %429 = vmatpush1.msra.mxu0 0.0
    %430 = vmatprep.subr.mxu0 0.0
    %431 = vmatpush1.msra.mxu0 0.0
    %432 = vmatprep.subr.mxu0 0.0
    %433 = vmatpush1.msra.mxu0 0.0
    %434 = vmatprep.subr.mxu0 0.0
    %435 = vmatpush1.msra.mxu0 0.0
    %436 = vmatprep.subr.mxu0 0.0
    %437 = vmatpush1.msra.mxu0 0.0
    %438 = vmatprep.subr.mxu0 0.0
    %439 = vmatpush1.msra.mxu0 0.0
    %440 = vmatprep.subr.mxu0 0.0
    %441 = vmatpush1.msra.mxu0 0.0
    %442 = vmatprep.subr.mxu0 0.0
    %443 = vmatpush1.msra.mxu0 0.0
    %444 = vmatprep.subr.mxu0 0.0
    %445 = vmatpush1.msra.mxu0 0.0
    %446 = vmatprep.subr.mxu0 0.0
    %447 = vmatpush1.msra.mxu0 0.0
    %448 = vmatprep.subr.mxu0 0.0
    %449 = vmatpush1.msra.mxu0 0.0
    %450 = vmatprep.subr.mxu0 0.0
    %451 = vmatpush1.msra.mxu0 0.0
    %452 = vmatprep.subr.mxu0 0.0
    %453 = vmatpush1.msra.mxu0 0.0
    %454 = vmatprep.subr.mxu0 0.0
    %455 = vmatpush1.msra.mxu0 0.0
    %456 = vmatprep.subr.mxu0 0.0
    %457 = vmatpush1.msra.mxu0 0.0
    %458 = vmatprep.subr.mxu0 0.0
    %459 = vmatpush1.msra.mxu0 0.0
    %460 = vmatprep.subr.mxu0 0.0
    %461 = vmatpush1.msra.mxu0 0.0
    %462 = vmatprep.subr.mxu0 0.0
    %463 = vmatpush1.msra.mxu0 0.0
    %464 = vmatprep.subr.mxu0 0.0
    %465 = vmatpush1.msra.mxu0 0.0
    %466 = vmatprep.subr.mxu0 0.0
    %467 = vmatpush1.msra.mxu0 0.0
    %468 = vmatprep.mubr.f32.mxu0 0.0
    %469 = vmatmul.mubr.f32.gmra.mrb[0].mxu0 %v402
    %v470 = vpop.f32.mrb[0].mxu0
    %v471 = vadd.f32 0.0, %v470
    %v472 = vpop.f32.mrb[0].mxu0
    %473 = vdwg.mxu0
    %v475 = vsel %vm146, %v471, 0
    %477 = vmatprep.subr.mxu0 0.0
    %478 = vmatpush1.msra.mxu0 %v65
    %479 = vmatprep.subr.mxu0 0.0
    %480 = vmatpush1.msra.mxu0 %v66
    %481 = vmatprep.subr.mxu0 0.0
    %482 = vmatpush1.msra.mxu0 0.0
    %483 = vmatprep.subr.mxu0 0.0
    %484 = vmatpush1.msra.mxu0 0.0
    %485 = vmatprep.subr.mxu0 0.0
    %486 = vmatpush1.msra.mxu0 0.0
    %487 = vmatprep.subr.mxu0 0.0
    %488 = vmatpush1.msra.mxu0 0.0
    %489 = vmatprep.subr.mxu0 0.0
    %490 = vmatpush1.msra.mxu0 0.0
    %491 = vmatprep.subr.mxu0 0.0
    %492 = vmatpush1.msra.mxu0 0.0
    %493 = vmatprep.subr.mxu0 0.0
    %494 = vmatpush1.msra.mxu0 0.0
    %495 = vmatprep.subr.mxu0 0.0
    %496 = vmatpush1.msra.mxu0 0.0
    %497 = vmatprep.subr.mxu0 0.0
    %498 = vmatpush1.msra.mxu0 0.0
    %499 = vmatprep.subr.mxu0 0.0
    %500 = vmatpush1.msra.mxu0 0.0
    %501 = vmatprep.subr.mxu0 0.0
    %502 = vmatpush1.msra.mxu0 0.0
    %503 = vmatprep.subr.mxu0 0.0
    %504 = vmatpush1.msra.mxu0 0.0
    %505 = vmatprep.subr.mxu0 0.0
    %506 = vmatpush1.msra.mxu0 0.0
    %507 = vmatprep.subr.mxu0 0.0
    %508 = vmatpush1.msra.mxu0 0.0
    %509 = vmatprep.subr.mxu0 0.0
    %510 = vmatpush1.msra.mxu0 0.0
    %511 = vmatprep.subr.mxu0 0.0
    %512 = vmatpush1.msra.mxu0 0.0
    %513 = vmatprep.subr.mxu0 0.0
    %514 = vmatpush1.msra.mxu0 0.0
    %515 = vmatprep.subr.mxu0 0.0
    %516 = vmatpush1.msra.mxu0 0.0
    %517 = vmatprep.subr.mxu0 0.0
    %518 = vmatpush1.msra.mxu0 0.0
    %519 = vmatprep.subr.mxu0 0.0
    %520 = vmatpush1.msra.mxu0 0.0
    %521 = vmatprep.subr.mxu0 0.0
    %522 = vmatpush1.msra.mxu0 0.0
    %523 = vmatprep.subr.mxu0 0.0
    %524 = vmatpush1.msra.mxu0 0.0
    %525 = vmatprep.subr.mxu0 0.0
    %526 = vmatpush1.msra.mxu0 0.0
    %527 = vmatprep.subr.mxu0 0.0
    %528 = vmatpush1.msra.mxu0 0.0
    %529 = vmatprep.subr.mxu0 0.0
    %530 = vmatpush1.msra.mxu0 0.0
    %531 = vmatprep.subr.mxu0 0.0
    %532 = vmatpush1.msra.mxu0 0.0
    %533 = vmatprep.subr.mxu0 0.0
    %534 = vmatpush1.msra.mxu0 0.0
    %535 = vmatprep.subr.mxu0 0.0
    %536 = vmatpush1.msra.mxu0 0.0
    %537 = vmatprep.subr.mxu0 0.0
    %538 = vmatpush1.msra.mxu0 0.0
    %539 = vmatprep.subr.mxu0 0.0
    %540 = vmatpush1.msra.mxu0 0.0
    %541 = vmatprep.mubr.f32.mxu0 0.0
    %542 = vmatmul.mubr.f32.gmra.mrb[0].mxu0 %v475
    %v543 = vpop.f32.mrb[0].mxu0
    %v544 = vadd.f32 0.0, %v543
    %v545 = vpop.f32.mrb[0].mxu0
    %546 = vdwg.mxu0
    %v548 = vsel %vm146, %v306, 0
    %550 = vmatprep.subr.mxu0 0.0
    %551 = vmatpush1.msra.mxu0 %v63
    %552 = vmatprep.subr.mxu0 0.0
    %553 = vmatpush1.msra.mxu0 %v64
    %554 = vmatprep.subr.mxu0 0.0
    %555 = vmatpush1.msra.mxu0 0.0
    %556 = vmatprep.subr.mxu0 0.0
    %557 = vmatpush1.msra.mxu0 0.0
    %558 = vmatprep.subr.mxu0 0.0
    %559 = vmatpush1.msra.mxu0 0.0
    %560 = vmatprep.subr.mxu0 0.0
    %561 = vmatpush1.msra.mxu0 0.0
    %562 = vmatprep.subr.mxu0 0.0
    %563 = vmatpush1.msra.mxu0 0.0
    %564 = vmatprep.subr.mxu0 0.0
    %565 = vmatpush1.msra.mxu0 0.0
    %566 = vmatprep.subr.mxu0 0.0
    %567 = vmatpush1.msra.mxu0 0.0
    %568 = vmatprep.subr.mxu0 0.0
    %569 = vmatpush1.msra.mxu0 0.0
    %570 = vmatprep.subr.mxu0 0.0
    %571 = vmatpush1.msra.mxu0 0.0
    %572 = vmatprep.subr.mxu0 0.0
    %573 = vmatpush1.msra.mxu0 0.0
    %574 = vmatprep.subr.mxu0 0.0
    %575 = vmatpush1.msra.mxu0 0.0
    %576 = vmatprep.subr.mxu0 0.0
    %577 = vmatpush1.msra.mxu0 0.0
    %578 = vmatprep.subr.mxu0 0.0
    %579 = vmatpush1.msra.mxu0 0.0
    %580 = vmatprep.subr.mxu0 0.0
    %581 = vmatpush1.msra.mxu0 0.0
    %582 = vmatprep.subr.mxu0 0.0
    %583 = vmatpush1.msra.mxu0 0.0
    %584 = vmatprep.subr.mxu0 0.0
    %585 = vmatpush1.msra.mxu0 0.0
    %586 = vmatprep.subr.mxu0 0.0
    %587 = vmatpush1.msra.mxu0 0.0
    %588 = vmatprep.subr.mxu0 0.0
    %589 = vmatpush1.msra.mxu0 0.0
    %590 = vmatprep.subr.mxu0 0.0
    %591 = vmatpush1.msra.mxu0 0.0
    %592 = vmatprep.subr.mxu0 0.0
    %593 = vmatpush1.msra.mxu0 0.0
    %594 = vmatprep.subr.mxu0 0.0
    %595 = vmatpush1.msra.mxu0 0.0
    %596 = vmatprep.subr.mxu0 0.0
    %597 = vmatpush1.msra.mxu0 0.0
    %598 = vmatprep.subr.mxu0 0.0
    %599 = vmatpush1.msra.mxu0 0.0
    %600 = vmatprep.subr.mxu0 0.0
    %601 = vmatpush1.msra.mxu0 0.0
    %602 = vmatprep.subr.mxu0 0.0
    %603 = vmatpush1.msra.mxu0 0.0
    %604 = vmatprep.subr.mxu0 0.0
    %605 = vmatpush1.msra.mxu0 0.0
    %606 = vmatprep.subr.mxu0 0.0
    %607 = vmatpush1.msra.mxu0 0.0
    %608 = vmatprep.subr.mxu0 0.0
    %609 = vmatpush1.msra.mxu0 0.0
    %610 = vmatprep.subr.mxu0 0.0
    %611 = vmatpush1.msra.mxu0 0.0
    %612 = vmatprep.subr.mxu0 0.0
    %613 = vmatpush1.msra.mxu0 0.0
    %614 = vmatprep.mubr.f32.mxu0 0.0
    %615 = vmatmul.mubr.f32.gmra.mrb[0].mxu0 %v548
    %v616 = vpop.f32.mrb[0].mxu0
    %v617 = vadd.f32 %v544, %v616
    %v618 = vpop.f32.mrb[0].mxu0
    %619 = vdwg.mxu0
    %v621 = vlaneseq
    %v622 = vshrl.u32 %v621, 7
    %v623 = vsub.s32 0, %v622
    %v624 = vrot.slane %v67, %v623
    %v626 = vadd.f32 %v617, %v624
    %627 = vst.msk [vmem:[#allocation8] sm:$0xff] %vm69, %v626
    %s628 = scalar_lea.vmem [#allocation2], 8
    %v629 = vld [vmem:[%s628] sm:$0xff]
    %v631 = vsel %vm69, %v629, 0
    %633 = vmatprep.subr.mxu0 0.0
    %634 = vmatpush1.msra.mxu0 %v59
    %635 = vmatprep.subr.mxu0 0.0
    %636 = vmatpush1.msra.mxu0 %v60
    %637 = vmatprep.subr.mxu0 0.0
    %638 = vmatpush1.msra.mxu0 %v61
    %639 = vmatprep.subr.mxu0 0.0
    %640 = vmatpush1.msra.mxu0 %v62
    %641 = vmatprep.subr.mxu0 0.0
    %642 = vmatpush1.msra.mxu0 0.0
    %643 = vmatprep.subr.mxu0 0.0
    %644 = vmatpush1.msra.mxu0 0.0
    %645 = vmatprep.subr.mxu0 0.0
    %646 = vmatpush1.msra.mxu0 0.0
    %647 = vmatprep.subr.mxu0 0.0
    %648 = vmatpush1.msra.mxu0 0.0
    %649 = vmatprep.subr.mxu0 0.0
    %650 = vmatpush1.msra.mxu0 0.0
    %651 = vmatprep.subr.mxu0 0.0
    %652 = vmatpush1.msra.mxu0 0.0
    %653 = vmatprep.subr.mxu0 0.0
    %654 = vmatpush1.msra.mxu0 0.0
    %655 = vmatprep.subr.mxu0 0.0
    %656 = vmatpush1.msra.mxu0 0.0
    %657 = vmatprep.subr.mxu0 0.0
    %658 = vmatpush1.msra.mxu0 0.0
    %659 = vmatprep.subr.mxu0 0.0
    %660 = vmatpush1.msra.mxu0 0.0
    %661 = vmatprep.subr.mxu0 0.0
    %662 = vmatpush1.msra.mxu0 0.0
    %663 = vmatprep.subr.mxu0 0.0
    %664 = vmatpush1.msra.mxu0 0.0
    %665 = vmatprep.subr.mxu0 0.0
    %666 = vmatpush1.msra.mxu0 0.0
    %667 = vmatprep.subr.mxu0 0.0
    %668 = vmatpush1.msra.mxu0 0.0
    %669 = vmatprep.subr.mxu0 0.0
    %670 = vmatpush1.msra.mxu0 0.0
    %671 = vmatprep.subr.mxu0 0.0
    %672 = vmatpush1.msra.mxu0 0.0
    %673 = vmatprep.subr.mxu0 0.0
    %674 = vmatpush1.msra.mxu0 0.0
    %675 = vmatprep.subr.mxu0 0.0
    %676 = vmatpush1.msra.mxu0 0.0
    %677 = vmatprep.subr.mxu0 0.0
    %678 = vmatpush1.msra.mxu0 0.0
    %679 = vmatprep.subr.mxu0 0.0
    %680 = vmatpush1.msra.mxu0 0.0
    %681 = vmatprep.subr.mxu0 0.0
    %682 = vmatpush1.msra.mxu0 0.0
    %683 = vmatprep.subr.mxu0 0.0
    %684 = vmatpush1.msra.mxu0 0.0
    %685 = vmatprep.subr.mxu0 0.0
    %686 = vmatpush1.msra.mxu0 0.0
    %687 = vmatprep.subr.mxu0 0.0
    %688 = vmatpush1.msra.mxu0 0.0
    %689 = vmatprep.subr.mxu0 0.0
    %690 = vmatpush1.msra.mxu0 0.0
    %691 = vmatprep.subr.mxu0 0.0
    %692 = vmatpush1.msra.mxu0 0.0
    %693 = vmatprep.subr.mxu0 0.0
    %694 = vmatpush1.msra.mxu0 0.0
    %695 = vmatprep.subr.mxu0 0.0
    %696 = vmatpush1.msra.mxu0 0.0
    %697 = vmatprep.mubr.f32.mxu0 0.0
    %698 = vmatmul.mubr.f32.gmra.mrb[0].mxu0 %v631
    %v699 = vpop.f32.mrb[0].mxu0
    %v700 = vadd.f32 0.0, %v699
    %v701 = vpop.f32.mrb[0].mxu0
    %702 = vdwg.mxu0
    %704 = vrot.lane.b32.xlu0 %v700, 96
    %v705 = vpop.permute.xlu0 %704
    %v706 = vsel %vm146, %v700, 0
    %v708 = vsel %vm146, %v705, 0
    %710 = vmatprep.subr.mxu0 0.0
    %711 = vmatpush1.xpose.msra.mxu0 %v708
    %712 = vmatprep.subr.mxu0 0.0
    %713 = vmatpush1.xpose.msra.mxu0 0.0
    %714 = vmatprep.subr.mxu0 0.0
    %715 = vmatpush1.xpose.msra.mxu0 0.0
    %716 = vmatprep.subr.mxu0 0.0
    %717 = vmatpush1.xpose.msra.mxu0 0.0
    %718 = vmatprep.subr.mxu0 0.0
    %719 = vmatpush1.xpose.msra.mxu0 0.0
    %720 = vmatprep.subr.mxu0 0.0
    %721 = vmatpush1.xpose.msra.mxu0 0.0
    %722 = vmatprep.subr.mxu0 0.0
    %723 = vmatpush1.xpose.msra.mxu0 0.0
    %724 = vmatprep.subr.mxu0 0.0
    %725 = vmatpush1.xpose.msra.mxu0 0.0
    %726 = vmatprep.subr.mxu0 0.0
    %727 = vmatpush1.xpose.msra.mxu0 0.0
    %728 = vmatprep.subr.mxu0 0.0
    %729 = vmatpush1.xpose.msra.mxu0 0.0
    %730 = vmatprep.subr.mxu0 0.0
    %731 = vmatpush1.xpose.msra.mxu0 0.0
    %732 = vmatprep.subr.mxu0 0.0
    %733 = vmatpush1.xpose.msra.mxu0 0.0
    %734 = vmatprep.subr.mxu0 0.0
    %735 = vmatpush1.xpose.msra.mxu0 0.0
    %736 = vmatprep.subr.mxu0 0.0
    %737 = vmatpush1.xpose.msra.mxu0 0.0
    %738 = vmatprep.subr.mxu0 0.0
    %739 = vmatpush1.xpose.msra.mxu0 0.0
    %740 = vmatprep.subr.mxu0 0.0
    %741 = vmatpush1.xpose.msra.mxu0 0.0
    %742 = vmatprep.subr.mxu0 0.0
    %743 = vmatpush1.xpose.msra.mxu0 0.0
    %744 = vmatprep.subr.mxu0 0.0
    %745 = vmatpush1.xpose.msra.mxu0 0.0
    %746 = vmatprep.subr.mxu0 0.0
    %747 = vmatpush1.xpose.msra.mxu0 0.0
    %748 = vmatprep.subr.mxu0 0.0
    %749 = vmatpush1.xpose.msra.mxu0 0.0
    %750 = vmatprep.subr.mxu0 0.0
    %751 = vmatpush1.xpose.msra.mxu0 0.0
    %752 = vmatprep.subr.mxu0 0.0
    %753 = vmatpush1.xpose.msra.mxu0 0.0
    %754 = vmatprep.subr.mxu0 0.0
    %755 = vmatpush1.xpose.msra.mxu0 0.0
    %756 = vmatprep.subr.mxu0 0.0
    %757 = vmatpush1.xpose.msra.mxu0 0.0
    %758 = vmatprep.subr.mxu0 0.0
    %759 = vmatpush1.xpose.msra.mxu0 0.0
    %760 = vmatprep.subr.mxu0 0.0
    %761 = vmatpush1.xpose.msra.mxu0 0.0
    %762 = vmatprep.subr.mxu0 0.0
    %763 = vmatpush1.xpose.msra.mxu0 0.0
    %764 = vmatprep.subr.mxu0 0.0
    %765 = vmatpush1.xpose.msra.mxu0 0.0
    %766 = vmatprep.subr.mxu0 0.0
    %767 = vmatpush1.xpose.msra.mxu0 0.0
    %768 = vmatprep.subr.mxu0 0.0
    %769 = vmatpush1.xpose.msra.mxu0 0.0
    %770 = vmatprep.subr.mxu0 0.0
    %771 = vmatpush1.xpose.msra.mxu0 0.0
    %772 = vmatprep.subr.mxu0 0.0
    %773 = vmatpush1.xpose.msra.mxu0 0.0
    %774 = vmatprep.mubr.f32.mxu0 0.0
    %775 = vmatmul.mubr.f32.gmra.mrb[0].mxu0 %v706
    %v776 = vpop.f32.mrb[0].mxu0
    %v777 = vadd.f32 0.0, %v776
    %v778 = vpop.f32.mrb[0].mxu0
    %779 = vdwg.mxu0
    %v780 = vsel %vm221, %v777, -inf
    %781 = vmax.xlane.f32.xlu0 %v780
    %v782 = vpop.xlane.xlu0 %781
    %v783 = vsub.f32 %v777, %v782
    %v784 = vmul.f32 %v783, 1.442695
    %v785 = vpow.pop %v784
    %v786 = vsel %vm221, %v785, 0.0
    %787 = vadd.xlane.f32.xlu0 %v786
    %v788 = vpop.xlane.xlu0 %787
    %v789 = vrcp.pop %v788
    %v790 = vmul.f32 %v785, %v789
    %791 = vrot.lane.b32.xlu0 %v700, 64
    %v792 = vpop.permute.xlu0 %791
    %v795 = vsel %vm221, %v790, 0
    %797 = vmatprep.subr.mxu0 0.0
    %798 = vmatpush1.msra.mxu0 %v792
    %799 = vmatprep.subr.mxu0 0.0
    %800 = vmatpush1.msra.mxu0 0.0
    %801 = vmatprep.subr.mxu0 0.0
    %802 = vmatpush1.msra.mxu0 0.0
    %803 = vmatprep.subr.mxu0 0.0
    %804 = vmatpush1.msra.mxu0 0.0
    %805 = vmatprep.subr.mxu0 0.0
    %806 = vmatpush1.msra.mxu0 0.0
    %807 = vmatprep.subr.mxu0 0.0
    %808 = vmatpush1.msra.mxu0 0.0
    %809 = vmatprep.subr.mxu0 0.0
    %810 = vmatpush1.msra.mxu0 0.0
    %811 = vmatprep.subr.mxu0 0.0
    %812 = vmatpush1.msra.mxu0 0.0
    %813 = vmatprep.subr.mxu0 0.0
    %814 = vmatpush1.msra.mxu0 0.0
    %815 = vmatprep.subr.mxu0 0.0
    %816 = vmatpush1.msra.mxu0 0.0
    %817 = vmatprep.subr.mxu0 0.0
    %818 = vmatpush1.msra.mxu0 0.0
    %819 = vmatprep.subr.mxu0 0.0
    %820 = vmatpush1.msra.mxu0 0.0
    %821 = vmatprep.subr.mxu0 0.0
    %822 = vmatpush1.msra.mxu0 0.0
    %823 = vmatprep.subr.mxu0 0.0
    %824 = vmatpush1.msra.mxu0 0.0
    %825 = vmatprep.subr.mxu0 0.0
    %826 = vmatpush1.msra.mxu0 0.0
    %827 = vmatprep.subr.mxu0 0.0
    %828 = vmatpush1.msra.mxu0 0.0
    %829 = vmatprep.subr.mxu0 0.0
    %830 = vmatpush1.msra.mxu0 0.0
    %831 = vmatprep.subr.mxu0 0.0
    %832 = vmatpush1.msra.mxu0 0.0
    %833 = vmatprep.subr.mxu0 0.0
    %834 = vmatpush1.msra.mxu0 0.0
    %835 = vmatprep.subr.mxu0 0.0
    %836 = vmatpush1.msra.mxu0 0.0
    %837 = vmatprep.subr.mxu0 0.0
    %838 = vmatpush1.msra.mxu0 0.0
    %839 = vmatprep.subr.mxu0 0.0
    %840 = vmatpush1.msra.mxu0 0.0
    %841 = vmatprep.subr.mxu0 0.0
    %842 = vmatpush1.msra.mxu0 0.0
    %843 = vmatprep.subr.mxu0 0.0
    %844 = vmatpush1.msra.mxu0 0.0
    %845 = vmatprep.subr.mxu0 0.0
    %846 = vmatpush1.msra.mxu0 0.0
    %847 = vmatprep.subr.mxu0 0.0
    %848 = vmatpush1.msra.mxu0 0.0
    %849 = vmatprep.subr.mxu0 0.0
    %850 = vmatpush1.msra.mxu0 0.0
    %851 = vmatprep.subr.mxu0 0.0
    %852 = vmatpush1.msra.mxu0 0.0
    %853 = vmatprep.subr.mxu0 0.0
    %854 = vmatpush1.msra.mxu0 0.0
    %855 = vmatprep.subr.mxu0 0.0
    %856 = vmatpush1.msra.mxu0 0.0
    %857 = vmatprep.subr.mxu0 0.0
    %858 = vmatpush1.msra.mxu0 0.0
    %859 = vmatprep.subr.mxu0 0.0
    %860 = vmatpush1.msra.mxu0 0.0
    %861 = vmatprep.mubr.f32.mxu0 0.0
    %862 = vmatmul.mubr.f32.gmra.mrb[0].mxu0 %v795
    %v863 = vpop.f32.mrb[0].mxu0
    %v864 = vadd.f32 0.0, %v863
    %v865 = vpop.f32.mrb[0].mxu0
    %866 = vdwg.mxu0
    %867 = vrot.lane.b32.xlu0 %v700, 112
    %v868 = vpop.permute.xlu0 %867
    %869 = vrot.lane.b32.xlu0 %v700, 80
    %v870 = vpop.permute.xlu0 %869
    %v871 = vsel %vm146, %v868, 0
    %v873 = vsel %vm146, %v870, 0
    %875 = vmatprep.subr.mxu0 0.0
    %876 = vmatpush1.xpose.msra.mxu0 %v873
    %877 = vmatprep.subr.mxu0 0.0
    %878 = vmatpush1.xpose.msra.mxu0 0.0
    %879 = vmatprep.subr.mxu0 0.0
    %880 = vmatpush1.xpose.msra.mxu0 0.0
    %881 = vmatprep.subr.mxu0 0.0
    %882 = vmatpush1.xpose.msra.mxu0 0.0
    %883 = vmatprep.subr.mxu0 0.0
    %884 = vmatpush1.xpose.msra.mxu0 0.0
    %885 = vmatprep.subr.mxu0 0.0
    %886 = vmatpush1.xpose.msra.mxu0 0.0
    %887 = vmatprep.subr.mxu0 0.0
    %888 = vmatpush1.xpose.msra.mxu0 0.0
    %889 = vmatprep.subr.mxu0 0.0
    %890 = vmatpush1.xpose.msra.mxu0 0.0
    %891 = vmatprep.subr.mxu0 0.0
    %892 = vmatpush1.xpose.msra.mxu0 0.0
    %893 = vmatprep.subr.mxu0 0.0
    %894 = vmatpush1.xpose.msra.mxu0 0.0
    %895 = vmatprep.subr.mxu0 0.0
    %896 = vmatpush1.xpose.msra.mxu0 0.0
    %897 = vmatprep.subr.mxu0 0.0
    %898 = vmatpush1.xpose.msra.mxu0 0.0
    %899 = vmatprep.subr.mxu0 0.0
    %900 = vmatpush1.xpose.msra.mxu0 0.0
    %901 = vmatprep.subr.mxu0 0.0
    %902 = vmatpush1.xpose.msra.mxu0 0.0
    %903 = vmatprep.subr.mxu0 0.0
    %904 = vmatpush1.xpose.msra.mxu0 0.0
    %905 = vmatprep.subr.mxu0 0.0
    %906 = vmatpush1.xpose.msra.mxu0 0.0
    %907 = vmatprep.subr.mxu0 0.0
    %908 = vmatpush1.xpose.msra.mxu0 0.0
    %909 = vmatprep.subr.mxu0 0.0
    %910 = vmatpush1.xpose.msra.mxu0 0.0
    %911 = vmatprep.subr.mxu0 0.0
    %912 = vmatpush1.xpose.msra.mxu0 0.0
    %913 = vmatprep.subr.mxu0 0.0
    %914 = vmatpush1.xpose.msra.mxu0 0.0
    %915 = vmatprep.subr.mxu0 0.0
    %916 = vmatpush1.xpose.msra.mxu0 0.0
    %917 = vmatprep.subr.mxu0 0.0
    %918 = vmatpush1.xpose.msra.mxu0 0.0
    %919 = vmatprep.subr.mxu0 0.0
    %920 = vmatpush1.xpose.msra.mxu0 0.0
    %921 = vmatprep.subr.mxu0 0.0
    %922 = vmatpush1.xpose.msra.mxu0 0.0
    %923 = vmatprep.subr.mxu0 0.0
    %924 = vmatpush1.xpose.msra.mxu0 0.0
    %925 = vmatprep.subr.mxu0 0.0
    %926 = vmatpush1.xpose.msra.mxu0 0.0
    %927 = vmatprep.subr.mxu0 0.0
    %928 = vmatpush1.xpose.msra.mxu0 0.0
    %929 = vmatprep.subr.mxu0 0.0
    %930 = vmatpush1.xpose.msra.mxu0 0.0
    %931 = vmatprep.subr.mxu0 0.0
    %932 = vmatpush1.xpose.msra.mxu0 0.0
    %933 = vmatprep.subr.mxu0 0.0
    %934 = vmatpush1.xpose.msra.mxu0 0.0
    %935 = vmatprep.subr.mxu0 0.0
    %936 = vmatpush1.xpose.msra.mxu0 0.0
    %937 = vmatprep.subr.mxu0 0.0
    %938 = vmatpush1.xpose.msra.mxu0 0.0
    %939 = vmatprep.mubr.f32.mxu0 0.0
    %940 = vmatmul.mubr.f32.gmra.mrb[0].mxu0 %v871
    %v941 = vpop.f32.mrb[0].mxu0
    %v942 = vadd.f32 0.0, %v941
    %v943 = vpop.f32.mrb[0].mxu0
    %944 = vdwg.mxu0
    %v945 = vsel %vm221, %v942, -inf
    %946 = vmax.xlane.f32.xlu0 %v945
    %v947 = vpop.xlane.xlu0 %946
    %v948 = vsub.f32 %v942, %v947
    %v949 = vmul.f32 %v948, 1.442695
    %v950 = vpow.pop %v949
    %v951 = vsel %vm221, %v950, 0.0
    %952 = vadd.xlane.f32.xlu0 %v951
    %v953 = vpop.xlane.xlu0 %952
    %v954 = vrcp.pop %v953
    %v955 = vmul.f32 %v950, %v954
    %956 = vrot.lane.b32.xlu0 %v700, 48
    %v957 = vpop.permute.xlu0 %956
    %v960 = vsel %vm221, %v955, 0
    %962 = vmatprep.subr.mxu0 0.0
    %963 = vmatpush1.msra.mxu0 %v957
    %964 = vmatprep.subr.mxu0 0.0
    %965 = vmatpush1.msra.mxu0 0.0
    %966 = vmatprep.subr.mxu0 0.0
    %967 = vmatpush1.msra.mxu0 0.0
    %968 = vmatprep.subr.mxu0 0.0
    %969 = vmatpush1.msra.mxu0 0.0
    %970 = vmatprep.subr.mxu0 0.0
    %971 = vmatpush1.msra.mxu0 0.0
    %972 = vmatprep.subr.mxu0 0.0
    %973 = vmatpush1.msra.mxu0 0.0
    %974 = vmatprep.subr.mxu0 0.0
    %975 = vmatpush1.msra.mxu0 0.0
    %976 = vmatprep.subr.mxu0 0.0
    %977 = vmatpush1.msra.mxu0 0.0
    %978 = vmatprep.subr.mxu0 0.0
    %979 = vmatpush1.msra.mxu0 0.0
    %980 = vmatprep.subr.mxu0 0.0
    %981 = vmatpush1.msra.mxu0 0.0
    %982 = vmatprep.subr.mxu0 0.0
    %983 = vmatpush1.msra.mxu0 0.0
    %984 = vmatprep.subr.mxu0 0.0
    %985 = vmatpush1.msra.mxu0 0.0
    %986 = vmatprep.subr.mxu0 0.0
    %987 = vmatpush1.msra.mxu0 0.0
    %988 = vmatprep.subr.mxu0 0.0
    %989 = vmatpush1.msra.mxu0 0.0
    %990 = vmatprep.subr.mxu0 0.0
    %991 = vmatpush1.msra.mxu0 0.0
    %992 = vmatprep.subr.mxu0 0.0
    %993 = vmatpush1.msra.mxu0 0.0
    %994 = vmatprep.subr.mxu0 0.0
    %995 = vmatpush1.msra.mxu0 0.0
    %996 = vmatprep.subr.mxu0 0.0
    %997 = vmatpush1.msra.mxu0 0.0
    %998 = vmatprep.subr.mxu0 0.0
    %999 = vmatpush1.msra.mxu0 0.0
    %1000 = vmatprep.subr.mxu0 0.0
    %1001 = vmatpush1.msra.mxu0 0.0
    %1002 = vmatprep.subr.mxu0 0.0
    %1003 = vmatpush1.msra.mxu0 0.0
    %1004 = vmatprep.subr.mxu0 0.0
    %1005 = vmatpush1.msra.mxu0 0.0
    %1006 = vmatprep.subr.mxu0 0.0
    %1007 = vmatpush1.msra.mxu0 0.0
    %1008 = vmatprep.subr.mxu0 0.0
    %1009 = vmatpush1.msra.mxu0 0.0
    %1010 = vmatprep.subr.mxu0 0.0
    %1011 = vmatpush1.msra.mxu0 0.0
    %1012 = vmatprep.subr.mxu0 0.0
    %1013 = vmatpush1.msra.mxu0 0.0
    %1014 = vmatprep.subr.mxu0 0.0
    %1015 = vmatpush1.msra.mxu0 0.0
    %1016 = vmatprep.subr.mxu0 0.0
    %1017 = vmatpush1.msra.mxu0 0.0
    %1018 = vmatprep.subr.mxu0 0.0
    %1019 = vmatpush1.msra.mxu0 0.0
    %1020 = vmatprep.subr.mxu0 0.0
    %1021 = vmatpush1.msra.mxu0 0.0
    %1022 = vmatprep.subr.mxu0 0.0
    %1023 = vmatpush1.msra.mxu0 0.0
    %1024 = vmatprep.subr.mxu0 0.0
    %1025 = vmatpush1.msra.mxu0 0.0
    %1026 = vmatprep.mubr.f32.mxu0 0.0
    %1027 = vmatmul.mubr.f32.gmra.mrb[0].mxu0 %v960
    %v1028 = vpop.f32.mrb[0].mxu0
    %v1029 = vadd.f32 0.0, %v1028
    %v1030 = vpop.f32.mrb[0].mxu0
    %1031 = vdwg.mxu0
    %v1033 = vsel %vm146, %v1029, 0
    %1035 = vmatprep.subr.mxu0 0.0
    %1036 = vmatpush1.msra.mxu0 %v65
    %1037 = vmatprep.subr.mxu0 0.0
    %1038 = vmatpush1.msra.mxu0 %v66
    %1039 = vmatprep.subr.mxu0 0.0
    %1040 = vmatpush1.msra.mxu0 0.0
    %1041 = vmatprep.subr.mxu0 0.0
    %1042 = vmatpush1.msra.mxu0 0.0
    %1043 = vmatprep.subr.mxu0 0.0
    %1044 = vmatpush1.msra.mxu0 0.0
    %1045 = vmatprep.subr.mxu0 0.0
    %1046 = vmatpush1.msra.mxu0 0.0
    %1047 = vmatprep.subr.mxu0 0.0
    %1048 = vmatpush1.msra.mxu0 0.0
    %1049 = vmatprep.subr.mxu0 0.0
    %1050 = vmatpush1.msra.mxu0 0.0
    %1051 = vmatprep.subr.mxu0 0.0
    %1052 = vmatpush1.msra.mxu0 0.0
    %1053 = vmatprep.subr.mxu0 0.0
    %1054 = vmatpush1.msra.mxu0 0.0
    %1055 = vmatprep.subr.mxu0 0.0
    %1056 = vmatpush1.msra.mxu0 0.0
    %1057 = vmatprep.subr.mxu0 0.0
    %1058 = vmatpush1.msra.mxu0 0.0
    %1059 = vmatprep.subr.mxu0 0.0
    %1060 = vmatpush1.msra.mxu0 0.0
    %1061 = vmatprep.subr.mxu0 0.0
    %1062 = vmatpush1.msra.mxu0 0.0
    %1063 = vmatprep.subr.mxu0 0.0
    %1064 = vmatpush1.msra.mxu0 0.0
    %1065 = vmatprep.subr.mxu0 0.0
    %1066 = vmatpush1.msra.mxu0 0.0
    %1067 = vmatprep.subr.mxu0 0.0
    %1068 = vmatpush1.msra.mxu0 0.0
    %1069 = vmatprep.subr.mxu0 0.0
    %1070 = vmatpush1.msra.mxu0 0.0
    %1071 = vmatprep.subr.mxu0 0.0
    %1072 = vmatpush1.msra.mxu0 0.0
    %1073 = vmatprep.subr.mxu0 0.0
    %1074 = vmatpush1.msra.mxu0 0.0
    %1075 = vmatprep.subr.mxu0 0.0
    %1076 = vmatpush1.msra.mxu0 0.0
    %1077 = vmatprep.subr.mxu0 0.0
    %1078 = vmatpush1.msra.mxu0 0.0
    %1079 = vmatprep.subr.mxu0 0.0
    %1080 = vmatpush1.msra.mxu0 0.0
    %1081 = vmatprep.subr.mxu0 0.0
    %1082 = vmatpush1.msra.mxu0 0.0
    %1083 = vmatprep.subr.mxu0 0.0
    %1084 = vmatpush1.msra.mxu0 0.0
    %1085 = vmatprep.subr.mxu0 0.0
    %1086 = vmatpush1.msra.mxu0 0.0
    %1087 = vmatprep.subr.mxu0 0.0
    %1088 = vmatpush1.msra.mxu0 0.0
    %1089 = vmatprep.subr.mxu0 0.0
    %1090 = vmatpush1.msra.mxu0 0.0
    %1091 = vmatprep.subr.mxu0 0.0
    %1092 = vmatpush1.msra.mxu0 0.0
    %1093 = vmatprep.subr.mxu0 0.0
    %1094 = vmatpush1.msra.mxu0 0.0
    %1095 = vmatprep.subr.mxu0 0.0
    %1096 = vmatpush1.msra.mxu0 0.0
    %1097 = vmatprep.subr.mxu0 0.0
    %1098 = vmatpush1.msra.mxu0 0.0
    %1099 = vmatprep.mubr.f32.mxu0 0.0
    %1100 = vmatmul.mubr.f32.gmra.mrb[0].mxu0 %v1033
    %v1101 = vpop.f32.mrb[0].mxu0
    %v1102 = vadd.f32 0.0, %v1101
    %v1103 = vpop.f32.mrb[0].mxu0
    %1104 = vdwg.mxu0
    %v1106 = vsel %vm146, %v864, 0
    %1108 = vmatprep.subr.mxu0 0.0
    %1109 = vmatpush1.msra.mxu0 %v63
    %1110 = vmatprep.subr.mxu0 0.0
    %1111 = vmatpush1.msra.mxu0 %v64
    %1112 = vmatprep.subr.mxu0 0.0
    %1113 = vmatpush1.msra.mxu0 0.0
    %1114 = vmatprep.subr.mxu0 0.0
    %1115 = vmatpush1.msra.mxu0 0.0
    %1116 = vmatprep.subr.mxu0 0.0
    %1117 = vmatpush1.msra.mxu0 0.0
    %1118 = vmatprep.subr.mxu0 0.0
    %1119 = vmatpush1.msra.mxu0 0.0
    %1120 = vmatprep.subr.mxu0 0.0
    %1121 = vmatpush1.msra.mxu0 0.0
    %1122 = vmatprep.subr.mxu0 0.0
    %1123 = vmatpush1.msra.mxu0 0.0
    %1124 = vmatprep.subr.mxu0 0.0
    %1125 = vmatpush1.msra.mxu0 0.0
    %1126 = vmatprep.subr.mxu0 0.0
    %1127 = vmatpush1.msra.mxu0 0.0
    %1128 = vmatprep.subr.mxu0 0.0
    %1129 = vmatpush1.msra.mxu0 0.0
    %1130 = vmatprep.subr.mxu0 0.0
    %1131 = vmatpush1.msra.mxu0 0.0
    %1132 = vmatprep.subr.mxu0 0.0
    %1133 = vmatpush1.msra.mxu0 0.0
    %1134 = vmatprep.subr.mxu0 0.0
    %1135 = vmatpush1.msra.mxu0 0.0
    %1136 = vmatprep.subr.mxu0 0.0
    %1137 = vmatpush1.msra.mxu0 0.0
    %1138 = vmatprep.subr.mxu0 0.0
    %1139 = vmatpush1.msra.mxu0 0.0
    %1140 = vmatprep.subr.mxu0 0.0
    %1141 = vmatpush1.msra.mxu0 0.0
    %1142 = vmatprep.subr.mxu0 0.0
    %1143 = vmatpush1.msra.mxu0 0.0
    %1144 = vmatprep.subr.mxu0 0.0
    %1145 = vmatpush1.msra.mxu0 0.0
    %1146 = vmatprep.subr.mxu0 0.0
    %1147 = vmatpush1.msra.mxu0 0.0
    %1148 = vmatprep.subr.mxu0 0.0
    %1149 = vmatpush1.msra.mxu0 0.0
    %1150 = vmatprep.subr.mxu0 0.0
    %1151 = vmatpush1.msra.mxu0 0.0
    %1152 = vmatprep.subr.mxu0 0.0
    %1153 = vmatpush1.msra.mxu0 0.0
    %1154 = vmatprep.subr.mxu0 0.0
    %1155 = vmatpush1.msra.mxu0 0.0
    %1156 = vmatprep.subr.mxu0 0.0
    %1157 = vmatpush1.msra.mxu0 0.0
    %1158 = vmatprep.subr.mxu0 0.0
    %1159 = vmatpush1.msra.mxu0 0.0
    %1160 = vmatprep.subr.mxu0 0.0
    %1161 = vmatpush1.msra.mxu0 0.0
    %1162 = vmatprep.subr.mxu0 0.0
    %1163 = vmatpush1.msra.mxu0 0.0
    %1164 = vmatprep.subr.mxu0 0.0
    %1165 = vmatpush1.msra.mxu0 0.0
    %1166 = vmatprep.subr.mxu0 0.0
    %1167 = vmatpush1.msra.mxu0 0.0
    %1168 = vmatprep.subr.mxu0 0.0
    %1169 = vmatpush1.msra.mxu0 0.0
    %1170 = vmatprep.subr.mxu0 0.0
    %1171 = vmatpush1.msra.mxu0 0.0
    %1172 = vmatprep.mubr.f32.mxu0 0.0
    %1173 = vmatmul.mubr.f32.gmra.mrb[0].mxu0 %v1106
    %v1174 = vpop.f32.mrb[0].mxu0
    %v1175 = vadd.f32 %v1102, %v1174
    %v1176 = vpop.f32.mrb[0].mxu0
    %1177 = vdwg.mxu0
    %v1178 = vadd.f32 %v1175, %v624
    %1179 = vst.msk [vmem:[#allocation8 + $0x8] sm:$0xff] %vm69, %v1178
    // Predicated region
    $region30: #{tpu_custom_call.1} parent=1 // pred_check
      _
    $region31: #{tpu_custom_call.1} parent=1 // pred_check_branch
      %1181 = sbr.rel (0) target = $region33
    $region32: #{tpu_custom_call.1} parent=1 // pred_region
      %s1183 = ssub.s32 256, 256
      %1184 = vsyncadd [#allocation4], %s1183
      %s1185 = sshll.u32 [#allocation8], 4
      %s1186 = int_to_ptr.vmem [resolvable:$true] %s1185
      %1191 = dma.vmem_to_hbm [thread:$0]  %s1186, 256, %s4, [#allocation4], 128, 128, 8
    $region33: #{tpu_custom_call.1} parent=1 // pred_fallthru
      _
    // Predicated region
    $region34: #{tpu_custom_call.1} parent=1 // pred_check
      _
    $region35: #{tpu_custom_call.1} parent=1 // pred_check_branch
      %1193 = sbr.rel (0) target = $region37
    $region36: #{tpu_custom_call.1} parent=1 // pred_region
      %1194 = dma.done [#allocation4], 256
    $region37: #{tpu_custom_call.1} parent=1 // pred_fallthru
      _
    %1195 = vsyncpa [#allocation3], 1
    %1196 = vsyncpa [#allocation6], 1
    %1197 = vsyncpa [#allocation4], 1

</llo_original>
